<compile_context>
chip_gen: v6e
topology: v6e:2x2x1
jax: 0.10.0
libtpu: 0.0.40
codegen_flags: <defaults>
</compile_context>

<pallas_src>
import functools

import numpy as np
import jax
import jax.numpy as jnp
from jax.experimental import pallas as pl
from jax.experimental.pallas import tpu as pltpu


def _round_up(x, m):
    return ((x + m - 1) // m) * m


# ----------------------------------------------------------------------------
# forward(): left-pad along L to a multiple of s, then segment -> (B, C, N, s)
# ----------------------------------------------------------------------------
def forward_segment(x, s):
    """MultiSegmentTokenizer.forward(): pure layout (F.pad + view) -> XLA."""
    B, C, L = x.shape
    pad_len = (s - L % s) % s
    xp = jnp.pad(x, ((0, 0), (0, 0), (pad_len, 0)))
    return xp.reshape(B, C, (L + pad_len) // s, s)


# ----------------------------------------------------------------------------
# tokenize(): one fused kernel, lane-packed
# ----------------------------------------------------------------------------
def _tokenize_fused_kernel(w_ch_ref, x_ref, w_all_ref, e_rc_ref, e_rm_ref,
                           e_gc_ref, e_gm_ref, beta_ref, btok_ref, o_ref,
                           *, C, T, d, eps, univariate):
    """One (batch, packed-row tile) block.

    x_ref : (1, C, M, k*s)    k segments packed per lane row (lane-dense).
    o_ref : (1, T, M, 2*k*d)  per-segment [ctx | main] pairs, already in the
                              final interleaved lane order (dense stores).
    """
    inv_d = 1.0 / float(d)
    w_all = w_all_ref[...]
    # Block-diagonal projection on the MXU (K = k*s lanes): for every packed
    # row, segment j's ctx slot gets x_seg @ w_tmp and its main slot x_seg @ w_tok.
    proj = [jnp.dot(x_ref[0, c], w_all, preferred_element_type=jnp.float32)
            for c in range(C)]
    btok = btok_ref[...]

    for t in range(T):
        # ---- main path: tokenizer Linear + segmented RMSNorm ----------------
        main_t = proj[C - T + t] + btok
        ssq_m = jnp.dot(main_t * main_t, e_rm_ref[...],
                        preferred_element_type=jnp.float32)
        scale_m = jnp.dot(jax.lax.rsqrt(ssq_m * inv_d + eps), e_gm_ref[...],
                          preferred_element_type=jnp.float32)
        out_t = main_t * scale_m                    # ctx lane slots -> exactly 0
        if not univariate:
            # ---- context path: channel mix (C scalar FMAs on the VPU) -------
            acc = proj[0] * w_ch_ref[0, t]
            for c in range(1, C):
                acc = acc + proj[c] * w_ch_ref[c, t]
            ctx_t = acc + beta_ref[pl.ds(t, 1), :]
            ssq_c = jnp.dot(ctx_t * ctx_t, e_rc_ref[...],
                            preferred_element_type=jnp.float32)
            scale_c = jnp.dot(jax.lax.rsqrt(ssq_c * inv_d + eps), e_gc_ref[...],
                              preferred_element_type=jnp.float32)
            out_t = out_t + ctx_t * scale_c         # main lane slots -> exactly 0
        o_ref[0, t] = out_t


def _pick_pack_factor(N, s):
    """Segments packed per lane row (target k*s ~= 128 lanes, k must divide N).

    TODO(synk): for awkward N (e.g. prime), padding N up to a multiple of
    128//s before the call would restore full lane density.
    """
    k_max = max(1, 128 // s) if s <= 128 else 1
    k = 1
    for cand in range(1, min(k_max, N) + 1):
        if N % cand == 0:
            k = cand
    return k


def _vmem_budget_bytes():
    """(tile-picker budget, vmem_limit_bytes) per TPU generation."""
    kind = ""
    try:
        kind = jax.devices()[0].device_kind.lower()
    except Exception:
        pass
    if "v7" in kind or "7x" in kind:          # 64 MiB physical VMEM
        return 20 << 20, 44 << 20
    if "v5" in kind or "v6" in kind:          # 128 MiB physical VMEM
        return 48 << 20, 96 << 20
    return 20 << 20, 44 << 20                 # unknown: be conservative


def _pick_rows_per_tile(Nr, B, C, T, s, d, k, budget_bytes):
    """Packed rows (k segments each) per grid tile, using the PADDED VMEM
    footprint: lanes round up to 128, sublanes to 8, x2 double-buffering,
    plus resident weight blocks and in-kernel f32 temporaries."""
    lane_in = _round_up(k * s, 128)
    lane_out = _round_up(2 * k * d, 128)
    resident = 2 * 4 * (
        _round_up(k * s, 8) * lane_out             # w_all
        + 2 * _round_up(2 * k * d, 8) * 128        # e_red_ctx / e_red_main
        + 2 * _round_up(k, 8) * lane_out           # e_exp_gctx / e_exp_gmain
        + _round_up(T, 8) * lane_out               # beta_pk
        + 8 * lane_out)                            # btok_pk

    def fits(m):
        mp = _round_up(m, 8)
        blk_in = C * mp * lane_in * 4
        blk_out = T * mp * lane_out * 4
        temps = (C + 6) * mp * lane_out * 4 + 4 * mp * 128 * 4
        return resident + 2 * (blk_in + blk_out) + temps <= budget_bytes

    if Nr <= 8:
        return Nr
    m = 8
    while m + 8 <= Nr and fits(m + 8):
        m += 8
    m = min(m, Nr)
    # v7x megacore: keep >= 2 grid tiles so both TensorCores get work.
    if B * pl.cdiv(Nr, m) < 2 and Nr > 8:
        m = min(Nr, _round_up(pl.cdiv(Nr, 2), 8))
    return m


def tokenize_pallas(x_seg, params, number_of_targets, *, univariate=False,
                    rows_per_tile=None):
    """MultiSegmentTokenizer.tokenize() as a single fused, pipelined Pallas call."""
    # TODO(synk): tokenizer_output / inverse_tokenize / process_single_token are
    # not on the tokenize/forward path of the module and are omitted here.
    B, C, N, s = x_seg.shape
    d = params["w_tmp"].shape[1]
    T = number_of_targets if number_of_targets else C
    f32 = jnp.float32

    # --- lane packing: k segments (k*s lanes) per packed row ------------------
    k = _pick_pack_factor(N, s)
    Nr = N // k
    ks = k * s
    kd2 = 2 * k * d

    budget, vmem_limit = _vmem_budget_bytes()
    if rows_per_tile is None:
        M = _pick_rows_per_tile(Nr, B, C, T, s, d, k, budget)
    else:
        M = min(int(rows_per_tile), Nr)
        if M < Nr:
            M = max(8, (M // 8) * 8)
    grid = (B, pl.cdiv(Nr, M))

    # --- host-side packed weights (tiny; built once per call) -----------------
    w_tmp = params["w_tmp"].astype(f32)
    w_tok = params["w_tok"].astype(f32)
    b_tmp = params["b_tmp"].astype(f32)
    b_tok = params["b_tok"].astype(f32)
    w_ch = params["w_ch"].astype(f32)
    b_ch = params["b_ch"].astype(f32)
    g_ctx = params["g_ctx"].astype(f32)
    g_main = params["g_main"].astype(f32)

    eye_k = jnp.eye(k, dtype=f32)
    zeros_d = jnp.zeros((d,), f32)
    # block-diagonal [w_tmp | w_tok]: segment j -> lanes [j*2d, j*2d+d) (ctx)
    # and [j*2d+d, (j+1)*2d) (main)
    w_all = jnp.kron(eye_k, jnp.concatenate([w_tmp, w_tok], axis=1))       # (ks, 2kd)
    # segmented-RMSNorm helpers (0/1 selectors, gain expanders)
    e_red_ctx = jnp.kron(eye_k, jnp.concatenate(
        [jnp.ones((d, 1), f32), jnp.zeros((d, 1), f32)], axis=0))          # (2kd, k)
    e_red_main = jnp.kron(eye_k, jnp.concatenate(
        [jnp.zeros((d, 1), f32), jnp.ones((d, 1), f32)], axis=0))          # (2kd, k)
    e_exp_gctx = jnp.kron(eye_k, jnp.concatenate([g_ctx, zeros_d])[None, :])    # (k, 2kd)
    e_exp_gmain = jnp.kron(eye_k, jnp.concatenate([zeros_d, g_main])[None, :])  # (k, 2kd)
    # channel-projection bias folded through the temporal projection
    beta = b_ch[:, None] * jnp.sum(w_tmp, axis=0)[None, :] + b_tmp[None, :]     # (T, d)
    beta_pk = jnp.tile(jnp.concatenate([beta, jnp.zeros_like(beta)], axis=1), (1, k))
    btok_pk = jnp.tile(jnp.concatenate([zeros_d, b_tok])[None, :], (1, k))      # (1, 2kd)

    x4 = x_seg.astype(f32).reshape(B, C, Nr, ks)            # free, contiguous reshape

    kernel = functools.partial(_tokenize_fused_kernel, C=C, T=T, d=d,
                               eps=1e-5, univariate=univariate)
    smem = pltpu.MemorySpace.SMEM

    out = pl.pallas_call(
        kernel,
        out_shape=jax.ShapeDtypeStruct((B, T, Nr, kd2), f32),
        grid_spec=pltpu.PrefetchScalarGridSpec(
            num_scalar_prefetch=0,
            grid=grid,
            in_specs=[
                # tiny channel-projection matrix: scalar reads from SMEM
                pl.BlockSpec((C, T), lambda b, m: (0, 0), memory_space=smem),
                # activations: tiled over (batch, packed-row tile), double-buffered
                pl.BlockSpec((1, C, M, ks), lambda b, m: (b, 0, m, 0)),
                # resident weights / norm helpers (constant index maps)
                pl.BlockSpec((ks, kd2), lambda b, m: (0, 0)),   # w_all
                pl.BlockSpec((kd2, k), lambda b, m: (0, 0)),    # e_red_ctx
                pl.BlockSpec((kd2, k), lambda b, m: (0, 0)),    # e_red_main
                pl.BlockSpec((k, kd2), lambda b, m: (0, 0)),    # e_exp_gctx
                pl.BlockSpec((k, kd2), lambda b, m: (0, 0)),    # e_exp_gmain
                pl.BlockSpec((T, kd2), lambda b, m: (0, 0)),    # beta_pk
                pl.BlockSpec((1, kd2), lambda b, m: (0, 0)),    # btok_pk
            ],
            out_specs=pl.BlockSpec((1, T, M, kd2), lambda b, m: (b, 0, m, 0)),
        ),
        compiler_params=pltpu.CompilerParams(
            dimension_semantics=("parallel", "parallel"),
            vmem_limit_bytes=vmem_limit),
    )(w_ch, x4, w_all, e_red_ctx, e_red_main, e_exp_gctx, e_exp_gmain,
      beta_pk, btok_pk)

    # (B, T, Nr, 2*k*d) -> (B, T, 2N, d): contiguous, free metadata reshape; the
    # per-segment [ctx | main] interleave already happened in lane space.
    return out.reshape(B, T, 2 * N, d)


# ----------------------------------------------------------------------------
# Pure-JAX reference (mirrors the PyTorch module)
# ----------------------------------------------------------------------------
def tokenize_ref(x_seg, params, number_of_targets, univariate=False):
    B, C, N, s = x_seg.shape
    d = params["w_tmp"].shape[1]
    T = number_of_targets if number_of_targets else C

    def rms(v, g):
        return v * jax.lax.rsqrt(jnp.mean(v * v, axis=-1, keepdims=True) + 1e-5) * g

    x_ctx = jnp.transpose(x_seg, (0, 2, 3, 1)) @ params["w_ch"] + params["b_ch"]
    x_ctx = jnp.transpose(x_ctx, (0, 3, 1, 2)) @ params["w_tmp"] + params["b_tmp"]
    if univariate:
        x_ctx = jnp.zeros_like(x_ctx)
    x_main = x_seg[:, C - T:] @ params["w_tok"] + params["b_tok"]
    stacked = jnp.stack([rms(x_ctx, params["g_ctx"]),
                         rms(x_main, params["g_main"])], axis=3)
    return stacked.reshape(B, T, 2 * N, d)


# ----------------------------------------------------------------------------
if __name__ == "__main__":
    def make_params(key, C, T, s, d):
        kk = jax.random.split(key, 6)
        # Linear weights stored as (in, out) so kernels compute x @ W + b.
        return {
            "w_tok": 0.1 * jax.random.normal(kk[0], (s, d), jnp.float32),
            "b_tok": 0.1 * jax.random.normal(kk[1], (d,), jnp.float32),
            "w_ch":  0.1 * jax.random.normal(kk[2], (C, T), jnp.float32),
            "b_ch":  0.1 * jax.random.normal(kk[3], (T,), jnp.float32),
            "w_tmp": 0.1 * jax.random.normal(kk[4], (s, d), jnp.float32),
            "b_tmp": 0.1 * jax.random.normal(kk[5], (d,), jnp.float32),
            "g_ctx": jnp.ones((d,), jnp.float32),       # RMSNorm weights init = 1
            "g_main": jnp.ones((d,), jnp.float32),
        }

    key = jax.random.PRNGKey(0)

    # --- config 1: module-default small shapes (targets == channels) ---------
    B, C, L, s, d = 2, 4, 30, 8, 32
    number_of_targets = 0                                  # -> n_targets = n_channels
    T = number_of_targets if number_of_targets else C
    kx, kp, key = jax.random.split(key, 3)
    x = jax.random.normal(kx, (B, C, L), jnp.float32)
    params = make_params(kp, C, T, s, d)

    x_seg = forward_segment(x, s)                          # forward(): (B, C, N, s)
    jax.block_until_ready(x_seg)
    N = x_seg.shape[2]
    flat = np.asarray(x_seg).reshape(B, C, N * s)
    pad_len = N * s - L
    assert np.all(flat[:, :, :pad_len] == 0.0)
    np.testing.assert_array_equal(flat[:, :, pad_len:], np.asarray(x))

    tok = tokenize_pallas(x_seg, params, number_of_targets)
    jax.block_until_ready(tok)
    np.testing.assert_allclose(
        np.asarray(tok),
        np.asarray(tokenize_ref(x_seg, params, number_of_targets)),
        rtol=2e-5, atol=2e-5)

    # --- config 2: larger N (full 128-lane packing), T < C, default picker ---
    B2, C2, L2, s2, d2 = 2, 6, 2048, 8, 32
    targets2 = 2
    kx2, kp2, key = jax.random.split(key, 3)
    xb = jax.random.normal(kx2, (B2, C2, L2), jnp.float32)
    params2 = make_params(kp2, C2, targets2, s2, d2)
    xb_seg = forward_segment(xb, s2)                       # N = 256, k = 16
    tok2 = tokenize_pallas(xb_seg, params2, targets2)
    jax.block_until_ready(tok2)
    np.testing.assert_allclose(
        np.asarray(tok2),
        np.asarray(tokenize_ref(xb_seg, params2, targets2)),
        rtol=2e-5, atol=2e-5)

    # --- config 3: forced multi-tile grid + univariate path ------------------
    tok3 = tokenize_pallas(xb_seg, params2, targets2, univariate=True,
                           rows_per_tile=8)                # grid = (2, 2)
    jax.block_until_ready(tok3)
    np.testing.assert_allclose(
        np.asarray(tok3),
        np.asarray(tokenize_ref(xb_seg, params2, targets2, univariate=True)),
        rtol=2e-5, atol=2e-5)

    print("KERNEL_OK")
</pallas_src>

<mosaic_0001>
module attributes {stable_mosaic.version = 11 : i64} {
  func.func @_tokenize_fused_kernel(%arg0: i32, %arg1: i32, %arg2: memref<4x4xf32, #tpu.memory_space<smem>>, %arg3: memref<1x4x1x32xf32, #tpu.memory_space<vmem>>, %arg4: memref<32x256xf32, #tpu.memory_space<vmem>>, %arg5: memref<256x4xf32, #tpu.memory_space<vmem>>, %arg6: memref<256x4xf32, #tpu.memory_space<vmem>>, %arg7: memref<4x256xf32, #tpu.memory_space<vmem>>, %arg8: memref<4x256xf32, #tpu.memory_space<vmem>>, %arg9: memref<4x256xf32, #tpu.memory_space<vmem>>, %arg10: memref<1x256xf32, #tpu.memory_space<vmem>>, %arg11: memref<1x4x1x256xf32, #tpu.memory_space<vmem>>) attributes {dimension_semantics = [#tpu.dimension_semantics<parallel>, #tpu.dimension_semantics<parallel>], iteration_bounds = array<i64: 2, 1>, scalar_prefetch = 0 : i64, scratch_operands = 0 : i64, tpu.core_type = #tpu.core_type<tc>, window_params = [{transform_indices = @transform_0, window_bounds = array<i64: 4, 4>}, {transform_indices = @transform_1, window_bounds = array<i64: 1, 4, 1, 32>}, {pipeline_mode = #tpu.pipeline_mode<synchronous>, transform_indices = @transform_2, window_bounds = array<i64: 32, 256>}, {pipeline_mode = #tpu.pipeline_mode<synchronous>, transform_indices = @transform_3, window_bounds = array<i64: 256, 4>}, {pipeline_mode = #tpu.pipeline_mode<synchronous>, transform_indices = @transform_4, window_bounds = array<i64: 256, 4>}, {pipeline_mode = #tpu.pipeline_mode<synchronous>, transform_indices = @transform_5, window_bounds = array<i64: 4, 256>}, {pipeline_mode = #tpu.pipeline_mode<synchronous>, transform_indices = @transform_6, window_bounds = array<i64: 4, 256>}, {pipeline_mode = #tpu.pipeline_mode<synchronous>, transform_indices = @transform_7, window_bounds = array<i64: 4, 256>}, {pipeline_mode = #tpu.pipeline_mode<synchronous>, transform_indices = @transform_8, window_bounds = array<i64: 1, 256>}, {transform_indices = @transform_9, window_bounds = array<i64: 1, 4, 1, 256>}]} {
    %c0 = arith.constant 0 : index
    %c0_0 = arith.constant 0 : index
    %0 = vector.load %arg4[%c0, %c0_0] : memref<32x256xf32, #tpu.memory_space<vmem>>, vector<32x256xf32>
    %c0_1 = arith.constant 0 : index
    %c0_2 = arith.constant 0 : index
    %c0_3 = arith.constant 0 : index
    %c0_4 = arith.constant 0 : index
    %1 = vector.load %arg3[%c0_1, %c0_2, %c0_3, %c0_4] : memref<1x4x1x32xf32, #tpu.memory_space<vmem>>, vector<1x1x1x32xf32>
    %2 = vector.shape_cast %1 : vector<1x1x1x32xf32> to vector<1x32xf32>
    %cst = arith.constant dense<0.000000e+00> : vector<1x256xf32>
    %3 = tpu.matmul %2, %0, %cst {dimension_numbers = #tpu.dot_dimension_numbers<[1], [0], [0], [1], [0, 0, 1, 1], [], []>} : vector<1x32xf32>, vector<32x256xf32>, vector<1x256xf32> -> vector<1x256xf32>
    %c0_5 = arith.constant 0 : index
    %c1 = arith.constant 1 : index
    %c0_6 = arith.constant 0 : index
    %c0_7 = arith.constant 0 : index
    %4 = vector.load %arg3[%c0_5, %c1, %c0_6, %c0_7] : memref<1x4x1x32xf32, #tpu.memory_space<vmem>>, vector<1x1x1x32xf32>
    %5 = vector.shape_cast %4 : vector<1x1x1x32xf32> to vector<1x32xf32>
    %cst_8 = arith.constant dense<0.000000e+00> : vector<1x256xf32>
    %6 = tpu.matmul %5, %0, %cst_8 {dimension_numbers = #tpu.dot_dimension_numbers<[1], [0], [0], [1], [0, 0, 1, 1], [], []>} : vector<1x32xf32>, vector<32x256xf32>, vector<1x256xf32> -> vector<1x256xf32>
    %c0_9 = arith.constant 0 : index
    %c2 = arith.constant 2 : index
    %c0_10 = arith.constant 0 : index
    %c0_11 = arith.constant 0 : index
    %7 = vector.load %arg3[%c0_9, %c2, %c0_10, %c0_11] : memref<1x4x1x32xf32, #tpu.memory_space<vmem>>, vector<1x1x1x32xf32>
    %8 = vector.shape_cast %7 : vector<1x1x1x32xf32> to vector<1x32xf32>
    %cst_12 = arith.constant dense<0.000000e+00> : vector<1x256xf32>
    %9 = tpu.matmul %8, %0, %cst_12 {dimension_numbers = #tpu.dot_dimension_numbers<[1], [0], [0], [1], [0, 0, 1, 1], [], []>} : vector<1x32xf32>, vector<32x256xf32>, vector<1x256xf32> -> vector<1x256xf32>
    %c0_13 = arith.constant 0 : index
    %c3 = arith.constant 3 : index
    %c0_14 = arith.constant 0 : index
    %c0_15 = arith.constant 0 : index
    %10 = vector.load %arg3[%c0_13, %c3, %c0_14, %c0_15] : memref<1x4x1x32xf32, #tpu.memory_space<vmem>>, vector<1x1x1x32xf32>
    %11 = vector.shape_cast %10 : vector<1x1x1x32xf32> to vector<1x32xf32>
    %cst_16 = arith.constant dense<0.000000e+00> : vector<1x256xf32>
    %12 = tpu.matmul %11, %0, %cst_16 {dimension_numbers = #tpu.dot_dimension_numbers<[1], [0], [0], [1], [0, 0, 1, 1], [], []>} : vector<1x32xf32>, vector<32x256xf32>, vector<1x256xf32> -> vector<1x256xf32>
    %c0_17 = arith.constant 0 : index
    %c0_18 = arith.constant 0 : index
    %13 = vector.load %arg10[%c0_17, %c0_18] : memref<1x256xf32, #tpu.memory_space<vmem>>, vector<1x256xf32>
    %14 = arith.addf %3, %13 : vector<1x256xf32>
    %15 = arith.mulf %14, %14 : vector<1x256xf32>
    %c0_19 = arith.constant 0 : index
    %c0_20 = arith.constant 0 : index
    %16 = vector.load %arg6[%c0_19, %c0_20] : memref<256x4xf32, #tpu.memory_space<vmem>>, vector<256x4xf32>
    %cst_21 = arith.constant dense<0.000000e+00> : vector<1x4xf32>
    %17 = tpu.matmul %15, %16, %cst_21 {dimension_numbers = #tpu.dot_dimension_numbers<[1], [0], [0], [1], [0, 0, 1, 1], [], []>} : vector<1x256xf32>, vector<256x4xf32>, vector<1x4xf32> -> vector<1x4xf32>
    %cst_22 = arith.constant 3.125000e-02 : f32
    %18 = vector.broadcast %cst_22 : f32 to vector<1x4xf32>
    %19 = arith.mulf %17, %18 : vector<1x4xf32>
    %cst_23 = arith.constant 9.99999974E-6 : f32
    %20 = vector.broadcast %cst_23 : f32 to vector<1x4xf32>
    %21 = arith.addf %19, %20 : vector<1x4xf32>
    %22 = math.rsqrt %21 : vector<1x4xf32>
    %c0_24 = arith.constant 0 : index
    %c0_25 = arith.constant 0 : index
    %23 = vector.load %arg8[%c0_24, %c0_25] : memref<4x256xf32, #tpu.memory_space<vmem>>, vector<4x256xf32>
    %cst_26 = arith.constant dense<0.000000e+00> : vector<1x256xf32>
    %24 = tpu.matmul %22, %23, %cst_26 {dimension_numbers = #tpu.dot_dimension_numbers<[1], [0], [0], [1], [0, 0, 1, 1], [], []>} : vector<1x4xf32>, vector<4x256xf32>, vector<1x256xf32> -> vector<1x256xf32>
    %25 = arith.mulf %14, %24 : vector<1x256xf32>
    %c0_27 = arith.constant 0 : index
    %c0_28 = arith.constant 0 : index
    %26 = memref.load %arg2[%c0_27, %c0_28] : memref<4x4xf32, #tpu.memory_space<smem>>
    %27 = vector.broadcast %26 : f32 to vector<1x256xf32>
    %28 = arith.mulf %3, %27 : vector<1x256xf32>
    %c1_29 = arith.constant 1 : index
    %c0_30 = arith.constant 0 : index
    %29 = memref.load %arg2[%c1_29, %c0_30] : memref<4x4xf32, #tpu.memory_space<smem>>
    %30 = vector.broadcast %29 : f32 to vector<1x256xf32>
    %31 = arith.mulf %6, %30 : vector<1x256xf32>
    %32 = arith.addf %28, %31 : vector<1x256xf32>
    %c2_31 = arith.constant 2 : index
    %c0_32 = arith.constant 0 : index
    %33 = memref.load %arg2[%c2_31, %c0_32] : memref<4x4xf32, #tpu.memory_space<smem>>
    %34 = vector.broadcast %33 : f32 to vector<1x256xf32>
    %35 = arith.mulf %9, %34 : vector<1x256xf32>
    %36 = arith.addf %32, %35 : vector<1x256xf32>
    %c3_33 = arith.constant 3 : index
    %c0_34 = arith.constant 0 : index
    %37 = memref.load %arg2[%c3_33, %c0_34] : memref<4x4xf32, #tpu.memory_space<smem>>
    %38 = vector.broadcast %37 : f32 to vector<1x256xf32>
    %39 = arith.mulf %12, %38 : vector<1x256xf32>
    %40 = arith.addf %36, %39 : vector<1x256xf32>
    %c0_35 = arith.constant 0 : index
    %c0_36 = arith.constant 0 : index
    %41 = vector.load %arg9[%c0_35, %c0_36] : memref<4x256xf32, #tpu.memory_space<vmem>>, vector<1x256xf32>
    %42 = arith.addf %40, %41 : vector<1x256xf32>
    %43 = arith.mulf %42, %42 : vector<1x256xf32>
    %c0_37 = arith.constant 0 : index
    %c0_38 = arith.constant 0 : index
    %44 = vector.load %arg5[%c0_37, %c0_38] : memref<256x4xf32, #tpu.memory_space<vmem>>, vector<256x4xf32>
    %cst_39 = arith.constant dense<0.000000e+00> : vector<1x4xf32>
    %45 = tpu.matmul %43, %44, %cst_39 {dimension_numbers = #tpu.dot_dimension_numbers<[1], [0], [0], [1], [0, 0, 1, 1], [], []>} : vector<1x256xf32>, vector<256x4xf32>, vector<1x4xf32> -> vector<1x4xf32>
    %cst_40 = arith.constant 3.125000e-02 : f32
    %46 = vector.broadcast %cst_40 : f32 to vector<1x4xf32>
    %47 = arith.mulf %45, %46 : vector<1x4xf32>
    %cst_41 = arith.constant 9.99999974E-6 : f32
    %48 = vector.broadcast %cst_41 : f32 to vector<1x4xf32>
    %49 = arith.addf %47, %48 : vector<1x4xf32>
    %50 = math.rsqrt %49 : vector<1x4xf32>
    %c0_42 = arith.constant 0 : index
    %c0_43 = arith.constant 0 : index
    %51 = vector.load %arg7[%c0_42, %c0_43] : memref<4x256xf32, #tpu.memory_space<vmem>>, vector<4x256xf32>
    %cst_44 = arith.constant dense<0.000000e+00> : vector<1x256xf32>
    %52 = tpu.matmul %50, %51, %cst_44 {dimension_numbers = #tpu.dot_dimension_numbers<[1], [0], [0], [1], [0, 0, 1, 1], [], []>} : vector<1x4xf32>, vector<4x256xf32>, vector<1x256xf32> -> vector<1x256xf32>
    %53 = arith.mulf %42, %52 : vector<1x256xf32>
    %54 = arith.addf %25, %53 : vector<1x256xf32>
    %c0_45 = arith.constant 0 : index
    %c0_46 = arith.constant 0 : index
    %c0_47 = arith.constant 0 : index
    %c0_48 = arith.constant 0 : index
    %55 = vector.load %arg11[%c0_45, %c0_46, %c0_47, %c0_48] : memref<1x4x1x256xf32, #tpu.memory_space<vmem>>, vector<1x1x1x256xf32>
    %56 = vector.shape_cast %55 : vector<1x1x1x256xf32> to vector<1x256xf32>
    %57 = vector.shape_cast %54 : vector<1x256xf32> to vector<1x1x1x256xf32>
    tpu.vector_store %arg11[%c0_45, %c0_46, %c0_47, %c0_48], %57 {strides = array<i32>} : memref<1x4x1x256xf32, #tpu.memory_space<vmem>>, vector<1x1x1x256xf32>,
    %58 = arith.addf %6, %13 : vector<1x256xf32>
    %59 = arith.mulf %58, %58 : vector<1x256xf32>
    %c0_49 = arith.constant 0 : index
    %c0_50 = arith.constant 0 : index
    %60 = vector.load %arg6[%c0_49, %c0_50] : memref<256x4xf32, #tpu.memory_space<vmem>>, vector<256x4xf32>
    %cst_51 = arith.constant dense<0.000000e+00> : vector<1x4xf32>
    %61 = tpu.matmul %59, %60, %cst_51 {dimension_numbers = #tpu.dot_dimension_numbers<[1], [0], [0], [1], [0, 0, 1, 1], [], []>} : vector<1x256xf32>, vector<256x4xf32>, vector<1x4xf32> -> vector<1x4xf32>
    %cst_52 = arith.constant 3.125000e-02 : f32
    %62 = vector.broadcast %cst_52 : f32 to vector<1x4xf32>
    %63 = arith.mulf %61, %62 : vector<1x4xf32>
    %cst_53 = arith.constant 9.99999974E-6 : f32
    %64 = vector.broadcast %cst_53 : f32 to vector<1x4xf32>
    %65 = arith.addf %63, %64 : vector<1x4xf32>
    %66 = math.rsqrt %65 : vector<1x4xf32>
    %c0_54 = arith.constant 0 : index
    %c0_55 = arith.constant 0 : index
    %67 = vector.load %arg8[%c0_54, %c0_55] : memref<4x256xf32, #tpu.memory_space<vmem>>, vector<4x256xf32>
    %cst_56 = arith.constant dense<0.000000e+00> : vector<1x256xf32>
    %68 = tpu.matmul %66, %67, %cst_56 {dimension_numbers = #tpu.dot_dimension_numbers<[1], [0], [0], [1], [0, 0, 1, 1], [], []>} : vector<1x4xf32>, vector<4x256xf32>, vector<1x256xf32> -> vector<1x256xf32>
    %69 = arith.mulf %58, %68 : vector<1x256xf32>
    %c0_57 = arith.constant 0 : index
    %c1_58 = arith.constant 1 : index
    %70 = memref.load %arg2[%c0_57, %c1_58] : memref<4x4xf32, #tpu.memory_space<smem>>
    %71 = vector.broadcast %70 : f32 to vector<1x256xf32>
    %72 = arith.mulf %3, %71 : vector<1x256xf32>
    %c1_59 = arith.constant 1 : index
    %c1_60 = arith.constant 1 : index
    %73 = memref.load %arg2[%c1_59, %c1_60] : memref<4x4xf32, #tpu.memory_space<smem>>
    %74 = vector.broadcast %73 : f32 to vector<1x256xf32>
    %75 = arith.mulf %6, %74 : vector<1x256xf32>
    %76 = arith.addf %72, %75 : vector<1x256xf32>
    %c2_61 = arith.constant 2 : index
    %c1_62 = arith.constant 1 : index
    %77 = memref.load %arg2[%c2_61, %c1_62] : memref<4x4xf32, #tpu.memory_space<smem>>
    %78 = vector.broadcast %77 : f32 to vector<1x256xf32>
    %79 = arith.mulf %9, %78 : vector<1x256xf32>
    %80 = arith.addf %76, %79 : vector<1x256xf32>
    %c3_63 = arith.constant 3 : index
    %c1_64 = arith.constant 1 : index
    %81 = memref.load %arg2[%c3_63, %c1_64] : memref<4x4xf32, #tpu.memory_space<smem>>
    %82 = vector.broadcast %81 : f32 to vector<1x256xf32>
    %83 = arith.mulf %12, %82 : vector<1x256xf32>
    %84 = arith.addf %80, %83 : vector<1x256xf32>
    %c1_65 = arith.constant 1 : index
    %c0_66 = arith.constant 0 : index
    %85 = vector.load %arg9[%c1_65, %c0_66] : memref<4x256xf32, #tpu.memory_space<vmem>>, vector<1x256xf32>
    %86 = arith.addf %84, %85 : vector<1x256xf32>
    %87 = arith.mulf %86, %86 : vector<1x256xf32>
    %c0_67 = arith.constant 0 : index
    %c0_68 = arith.constant 0 : index
    %88 = vector.load %arg5[%c0_67, %c0_68] : memref<256x4xf32, #tpu.memory_space<vmem>>, vector<256x4xf32>
    %cst_69 = arith.constant dense<0.000000e+00> : vector<1x4xf32>
    %89 = tpu.matmul %87, %88, %cst_69 {dimension_numbers = #tpu.dot_dimension_numbers<[1], [0], [0], [1], [0, 0, 1, 1], [], []>} : vector<1x256xf32>, vector<256x4xf32>, vector<1x4xf32> -> vector<1x4xf32>
    %cst_70 = arith.constant 3.125000e-02 : f32
    %90 = vector.broadcast %cst_70 : f32 to vector<1x4xf32>
    %91 = arith.mulf %89, %90 : vector<1x4xf32>
    %cst_71 = arith.constant 9.99999974E-6 : f32
    %92 = vector.broadcast %cst_71 : f32 to vector<1x4xf32>
    %93 = arith.addf %91, %92 : vector<1x4xf32>
    %94 = math.rsqrt %93 : vector<1x4xf32>
    %c0_72 = arith.constant 0 : index
    %c0_73 = arith.constant 0 : index
    %95 = vector.load %arg7[%c0_72, %c0_73] : memref<4x256xf32, #tpu.memory_space<vmem>>, vector<4x256xf32>
    %cst_74 = arith.constant dense<0.000000e+00> : vector<1x256xf32>
    %96 = tpu.matmul %94, %95, %cst_74 {dimension_numbers = #tpu.dot_dimension_numbers<[1], [0], [0], [1], [0, 0, 1, 1], [], []>} : vector<1x4xf32>, vector<4x256xf32>, vector<1x256xf32> -> vector<1x256xf32>
    %97 = arith.mulf %86, %96 : vector<1x256xf32>
    %98 = arith.addf %69, %97 : vector<1x256xf32>
    %c0_75 = arith.constant 0 : index
    %c1_76 = arith.constant 1 : index
    %c0_77 = arith.constant 0 : index
    %c0_78 = arith.constant 0 : index
    %99 = vector.load %arg11[%c0_75, %c1_76, %c0_77, %c0_78] : memref<1x4x1x256xf32, #tpu.memory_space<vmem>>, vector<1x1x1x256xf32>
    %100 = vector.shape_cast %99 : vector<1x1x1x256xf32> to vector<1x256xf32>
    %101 = vector.shape_cast %98 : vector<1x256xf32> to vector<1x1x1x256xf32>
    tpu.vector_store %arg11[%c0_75, %c1_76, %c0_77, %c0_78], %101 {strides = array<i32>} : memref<1x4x1x256xf32, #tpu.memory_space<vmem>>, vector<1x1x1x256xf32>,
    %102 = arith.addf %9, %13 : vector<1x256xf32>
    %103 = arith.mulf %102, %102 : vector<1x256xf32>
    %c0_79 = arith.constant 0 : index
    %c0_80 = arith.constant 0 : index
    %104 = vector.load %arg6[%c0_79, %c0_80] : memref<256x4xf32, #tpu.memory_space<vmem>>, vector<256x4xf32>
    %cst_81 = arith.constant dense<0.000000e+00> : vector<1x4xf32>
    %105 = tpu.matmul %103, %104, %cst_81 {dimension_numbers = #tpu.dot_dimension_numbers<[1], [0], [0], [1], [0, 0, 1, 1], [], []>} : vector<1x256xf32>, vector<256x4xf32>, vector<1x4xf32> -> vector<1x4xf32>
    %cst_82 = arith.constant 3.125000e-02 : f32
    %106 = vector.broadcast %cst_82 : f32 to vector<1x4xf32>
    %107 = arith.mulf %105, %106 : vector<1x4xf32>
    %cst_83 = arith.constant 9.99999974E-6 : f32
    %108 = vector.broadcast %cst_83 : f32 to vector<1x4xf32>
    %109 = arith.addf %107, %108 : vector<1x4xf32>
    %110 = math.rsqrt %109 : vector<1x4xf32>
    %c0_84 = arith.constant 0 : index
    %c0_85 = arith.constant 0 : index
    %111 = vector.load %arg8[%c0_84, %c0_85] : memref<4x256xf32, #tpu.memory_space<vmem>>, vector<4x256xf32>
    %cst_86 = arith.constant dense<0.000000e+00> : vector<1x256xf32>
    %112 = tpu.matmul %110, %111, %cst_86 {dimension_numbers = #tpu.dot_dimension_numbers<[1], [0], [0], [1], [0, 0, 1, 1], [], []>} : vector<1x4xf32>, vector<4x256xf32>, vector<1x256xf32> -> vector<1x256xf32>
    %113 = arith.mulf %102, %112 : vector<1x256xf32>
    %c0_87 = arith.constant 0 : index
    %c2_88 = arith.constant 2 : index
    %114 = memref.load %arg2[%c0_87, %c2_88] : memref<4x4xf32, #tpu.memory_space<smem>>
    %115 = vector.broadcast %114 : f32 to vector<1x256xf32>
    %116 = arith.mulf %3, %115 : vector<1x256xf32>
    %c1_89 = arith.constant 1 : index
    %c2_90 = arith.constant 2 : index
    %117 = memref.load %arg2[%c1_89, %c2_90] : memref<4x4xf32, #tpu.memory_space<smem>>
    %118 = vector.broadcast %117 : f32 to vector<1x256xf32>
    %119 = arith.mulf %6, %118 : vector<1x256xf32>
    %120 = arith.addf %116, %119 : vector<1x256xf32>
    %c2_91 = arith.constant 2 : index
    %c2_92 = arith.constant 2 : index
    %121 = memref.load %arg2[%c2_91, %c2_92] : memref<4x4xf32, #tpu.memory_space<smem>>
    %122 = vector.broadcast %121 : f32 to vector<1x256xf32>
    %123 = arith.mulf %9, %122 : vector<1x256xf32>
    %124 = arith.addf %120, %123 : vector<1x256xf32>
    %c3_93 = arith.constant 3 : index
    %c2_94 = arith.constant 2 : index
    %125 = memref.load %arg2[%c3_93, %c2_94] : memref<4x4xf32, #tpu.memory_space<smem>>
    %126 = vector.broadcast %125 : f32 to vector<1x256xf32>
    %127 = arith.mulf %12, %126 : vector<1x256xf32>
    %128 = arith.addf %124, %127 : vector<1x256xf32>
    %c2_95 = arith.constant 2 : index
    %c0_96 = arith.constant 0 : index
    %129 = vector.load %arg9[%c2_95, %c0_96] : memref<4x256xf32, #tpu.memory_space<vmem>>, vector<1x256xf32>
    %130 = arith.addf %128, %129 : vector<1x256xf32>
    %131 = arith.mulf %130, %130 : vector<1x256xf32>
    %c0_97 = arith.constant 0 : index
    %c0_98 = arith.constant 0 : index
    %132 = vector.load %arg5[%c0_97, %c0_98] : memref<256x4xf32, #tpu.memory_space<vmem>>, vector<256x4xf32>
    %cst_99 = arith.constant dense<0.000000e+00> : vector<1x4xf32>
    %133 = tpu.matmul %131, %132, %cst_99 {dimension_numbers = #tpu.dot_dimension_numbers<[1], [0], [0], [1], [0, 0, 1, 1], [], []>} : vector<1x256xf32>, vector<256x4xf32>, vector<1x4xf32> -> vector<1x4xf32>
    %cst_100 = arith.constant 3.125000e-02 : f32
    %134 = vector.broadcast %cst_100 : f32 to vector<1x4xf32>
    %135 = arith.mulf %133, %134 : vector<1x4xf32>
    %cst_101 = arith.constant 9.99999974E-6 : f32
    %136 = vector.broadcast %cst_101 : f32 to vector<1x4xf32>
    %137 = arith.addf %135, %136 : vector<1x4xf32>
    %138 = math.rsqrt %137 : vector<1x4xf32>
    %c0_102 = arith.constant 0 : index
    %c0_103 = arith.constant 0 : index
    %139 = vector.load %arg7[%c0_102, %c0_103] : memref<4x256xf32, #tpu.memory_space<vmem>>, vector<4x256xf32>
    %cst_104 = arith.constant dense<0.000000e+00> : vector<1x256xf32>
    %140 = tpu.matmul %138, %139, %cst_104 {dimension_numbers = #tpu.dot_dimension_numbers<[1], [0], [0], [1], [0, 0, 1, 1], [], []>} : vector<1x4xf32>, vector<4x256xf32>, vector<1x256xf32> -> vector<1x256xf32>
    %141 = arith.mulf %130, %140 : vector<1x256xf32>
    %142 = arith.addf %113, %141 : vector<1x256xf32>
    %c0_105 = arith.constant 0 : index
    %c2_106 = arith.constant 2 : index
    %c0_107 = arith.constant 0 : index
    %c0_108 = arith.constant 0 : index
    %143 = vector.load %arg11[%c0_105, %c2_106, %c0_107, %c0_108] : memref<1x4x1x256xf32, #tpu.memory_space<vmem>>, vector<1x1x1x256xf32>
    %144 = vector.shape_cast %143 : vector<1x1x1x256xf32> to vector<1x256xf32>
    %145 = vector.shape_cast %142 : vector<1x256xf32> to vector<1x1x1x256xf32>
    tpu.vector_store %arg11[%c0_105, %c2_106, %c0_107, %c0_108], %145 {strides = array<i32>} : memref<1x4x1x256xf32, #tpu.memory_space<vmem>>, vector<1x1x1x256xf32>,
    %146 = arith.addf %12, %13 : vector<1x256xf32>
    %147 = arith.mulf %146, %146 : vector<1x256xf32>
    %c0_109 = arith.constant 0 : index
    %c0_110 = arith.constant 0 : index
    %148 = vector.load %arg6[%c0_109, %c0_110] : memref<256x4xf32, #tpu.memory_space<vmem>>, vector<256x4xf32>
    %cst_111 = arith.constant dense<0.000000e+00> : vector<1x4xf32>
    %149 = tpu.matmul %147, %148, %cst_111 {dimension_numbers = #tpu.dot_dimension_numbers<[1], [0], [0], [1], [0, 0, 1, 1], [], []>} : vector<1x256xf32>, vector<256x4xf32>, vector<1x4xf32> -> vector<1x4xf32>
    %cst_112 = arith.constant 3.125000e-02 : f32
    %150 = vector.broadcast %cst_112 : f32 to vector<1x4xf32>
    %151 = arith.mulf %149, %150 : vector<1x4xf32>
    %cst_113 = arith.constant 9.99999974E-6 : f32
    %152 = vector.broadcast %cst_113 : f32 to vector<1x4xf32>
    %153 = arith.addf %151, %152 : vector<1x4xf32>
    %154 = math.rsqrt %153 : vector<1x4xf32>
    %c0_114 = arith.constant 0 : index
    %c0_115 = arith.constant 0 : index
    %155 = vector.load %arg8[%c0_114, %c0_115] : memref<4x256xf32, #tpu.memory_space<vmem>>, vector<4x256xf32>
    %cst_116 = arith.constant dense<0.000000e+00> : vector<1x256xf32>
    %156 = tpu.matmul %154, %155, %cst_116 {dimension_numbers = #tpu.dot_dimension_numbers<[1], [0], [0], [1], [0, 0, 1, 1], [], []>} : vector<1x4xf32>, vector<4x256xf32>, vector<1x256xf32> -> vector<1x256xf32>
    %157 = arith.mulf %146, %156 : vector<1x256xf32>
    %c0_117 = arith.constant 0 : index
    %c3_118 = arith.constant 3 : index
    %158 = memref.load %arg2[%c0_117, %c3_118] : memref<4x4xf32, #tpu.memory_space<smem>>
    %159 = vector.broadcast %158 : f32 to vector<1x256xf32>
    %160 = arith.mulf %3, %159 : vector<1x256xf32>
    %c1_119 = arith.constant 1 : index
    %c3_120 = arith.constant 3 : index
    %161 = memref.load %arg2[%c1_119, %c3_120] : memref<4x4xf32, #tpu.memory_space<smem>>
    %162 = vector.broadcast %161 : f32 to vector<1x256xf32>
    %163 = arith.mulf %6, %162 : vector<1x256xf32>
    %164 = arith.addf %160, %163 : vector<1x256xf32>
    %c2_121 = arith.constant 2 : index
    %c3_122 = arith.constant 3 : index
    %165 = memref.load %arg2[%c2_121, %c3_122] : memref<4x4xf32, #tpu.memory_space<smem>>
    %166 = vector.broadcast %165 : f32 to vector<1x256xf32>
    %167 = arith.mulf %9, %166 : vector<1x256xf32>
    %168 = arith.addf %164, %167 : vector<1x256xf32>
    %c3_123 = arith.constant 3 : index
    %c3_124 = arith.constant 3 : index
    %169 = memref.load %arg2[%c3_123, %c3_124] : memref<4x4xf32, #tpu.memory_space<smem>>
    %170 = vector.broadcast %169 : f32 to vector<1x256xf32>
    %171 = arith.mulf %12, %170 : vector<1x256xf32>
    %172 = arith.addf %168, %171 : vector<1x256xf32>
    %c3_125 = arith.constant 3 : index
    %c0_126 = arith.constant 0 : index
    %173 = vector.load %arg9[%c3_125, %c0_126] : memref<4x256xf32, #tpu.memory_space<vmem>>, vector<1x256xf32>
    %174 = arith.addf %172, %173 : vector<1x256xf32>
    %175 = arith.mulf %174, %174 : vector<1x256xf32>
    %c0_127 = arith.constant 0 : index
    %c0_128 = arith.constant 0 : index
    %176 = vector.load %arg5[%c0_127, %c0_128] : memref<256x4xf32, #tpu.memory_space<vmem>>, vector<256x4xf32>
    %cst_129 = arith.constant dense<0.000000e+00> : vector<1x4xf32>
    %177 = tpu.matmul %175, %176, %cst_129 {dimension_numbers = #tpu.dot_dimension_numbers<[1], [0], [0], [1], [0, 0, 1, 1], [], []>} : vector<1x256xf32>, vector<256x4xf32>, vector<1x4xf32> -> vector<1x4xf32>
    %cst_130 = arith.constant 3.125000e-02 : f32
    %178 = vector.broadcast %cst_130 : f32 to vector<1x4xf32>
    %179 = arith.mulf %177, %178 : vector<1x4xf32>
    %cst_131 = arith.constant 9.99999974E-6 : f32
    %180 = vector.broadcast %cst_131 : f32 to vector<1x4xf32>
    %181 = arith.addf %179, %180 : vector<1x4xf32>
    %182 = math.rsqrt %181 : vector<1x4xf32>
    %c0_132 = arith.constant 0 : index
    %c0_133 = arith.constant 0 : index
    %183 = vector.load %arg7[%c0_132, %c0_133] : memref<4x256xf32, #tpu.memory_space<vmem>>, vector<4x256xf32>
    %cst_134 = arith.constant dense<0.000000e+00> : vector<1x256xf32>
    %184 = tpu.matmul %182, %183, %cst_134 {dimension_numbers = #tpu.dot_dimension_numbers<[1], [0], [0], [1], [0, 0, 1, 1], [], []>} : vector<1x4xf32>, vector<4x256xf32>, vector<1x256xf32> -> vector<1x256xf32>
    %185 = arith.mulf %174, %184 : vector<1x256xf32>
    %186 = arith.addf %157, %185 : vector<1x256xf32>
    %c0_135 = arith.constant 0 : index
    %c3_136 = arith.constant 3 : index
    %c0_137 = arith.constant 0 : index
    %c0_138 = arith.constant 0 : index
    %187 = vector.load %arg11[%c0_135, %c3_136, %c0_137, %c0_138] : memref<1x4x1x256xf32, #tpu.memory_space<vmem>>, vector<1x1x1x256xf32>
    %188 = vector.shape_cast %187 : vector<1x1x1x256xf32> to vector<1x256xf32>
    %189 = vector.shape_cast %186 : vector<1x256xf32> to vector<1x1x1x256xf32>
    tpu.vector_store %arg11[%c0_135, %c3_136, %c0_137, %c0_138], %189 {strides = array<i32>} : memref<1x4x1x256xf32, #tpu.memory_space<vmem>>, vector<1x1x1x256xf32>,
    return
  }
  func.func @transform_0(%arg0: i32, %arg1: i32) -> (i32, i32) {
    %c0_i32 = arith.constant 0 : i32
    %c0_i32_0 = arith.constant 0 : i32
    %c0_i32_1 = arith.constant 0 : i32
    return %c0_i32, %c0_i32_0 : i32, i32
  }
  func.func @transform_1(%arg0: i32, %arg1: i32) -> (i32, i32, i32, i32) {
    %c0_i32 = arith.constant 0 : i32
    %c0_i32_0 = arith.constant 0 : i32
    %c0_i32_1 = arith.constant 0 : i32
    return %arg0, %c0_i32, %arg1, %c0_i32_0 : i32, i32, i32, i32
  }
  func.func @transform_2(%arg0: i32, %arg1: i32) -> (i32, i32) {
    %c0_i32 = arith.constant 0 : i32
    %c0_i32_0 = arith.constant 0 : i32
    %c0_i32_1 = arith.constant 0 : i32
    return %c0_i32, %c0_i32_0 : i32, i32
  }
  func.func @transform_3(%arg0: i32, %arg1: i32) -> (i32, i32) {
    %c0_i32 = arith.constant 0 : i32
    %c0_i32_0 = arith.constant 0 : i32
    %c0_i32_1 = arith.constant 0 : i32
    return %c0_i32, %c0_i32_0 : i32, i32
  }
  func.func @transform_4(%arg0: i32, %arg1: i32) -> (i32, i32) {
    %c0_i32 = arith.constant 0 : i32
    %c0_i32_0 = arith.constant 0 : i32
    %c0_i32_1 = arith.constant 0 : i32
    return %c0_i32, %c0_i32_0 : i32, i32
  }
  func.func @transform_5(%arg0: i32, %arg1: i32) -> (i32, i32) {
    %c0_i32 = arith.constant 0 : i32
    %c0_i32_0 = arith.constant 0 : i32
    %c0_i32_1 = arith.constant 0 : i32
    return %c0_i32, %c0_i32_0 : i32, i32
  }
  func.func @transform_6(%arg0: i32, %arg1: i32) -> (i32, i32) {
    %c0_i32 = arith.constant 0 : i32
    %c0_i32_0 = arith.constant 0 : i32
    %c0_i32_1 = arith.constant 0 : i32
    return %c0_i32, %c0_i32_0 : i32, i32
  }
  func.func @transform_7(%arg0: i32, %arg1: i32) -> (i32, i32) {
    %c0_i32 = arith.constant 0 : i32
    %c0_i32_0 = arith.constant 0 : i32
    %c0_i32_1 = arith.constant 0 : i32
    return %c0_i32, %c0_i32_0 : i32, i32
  }
  func.func @transform_8(%arg0: i32, %arg1: i32) -> (i32, i32) {
    %c0_i32 = arith.constant 0 : i32
    %c0_i32_0 = arith.constant 0 : i32
    %c0_i32_1 = arith.constant 0 : i32
    return %c0_i32, %c0_i32_0 : i32, i32
  }
  func.func @transform_9(%arg0: i32, %arg1: i32) -> (i32, i32, i32, i32) {
    %c0_i32 = arith.constant 0 : i32
    %c0_i32_0 = arith.constant 0 : i32
    %c0_i32_1 = arith.constant 0 : i32
    return %arg0, %c0_i32, %arg1, %c0_i32_0 : i32, i32, i32, i32
  }
}

</mosaic_0001>

<llo_original>
// kernel: tpu_custom_call.1
$region0: #{tpu_custom_call.1}
  #allocation0 [shape = 'u32[]', space=smem, size = 0x4, offset = 0x4, fixed_abs, tag = 'smem constant byte address 0x4 - core index']
  #allocation1 [shape = 'u32[144,128]{1,0:T(1,128)}', space=vmem, size = 0x12000, scoped, tag = 'internal scratch']
  %s0 = inlined_call_operand.vmem [shape: f32[4,4], index: 0, kind: input, shape index: {}]
  %s1 = inlined_call_operand.vmem [shape: f32[2,4,1,32], index: 1, kind: input, shape index: {}]
  %s2 = inlined_call_operand.vmem [shape: f32[32,256], index: 2, kind: input, shape index: {}]
  %s3 = inlined_call_operand.vmem [shape: f32[256,4], index: 3, kind: input, shape index: {}]
  %s4 = inlined_call_operand.vmem [shape: f32[256,4], index: 4, kind: input, shape index: {}]
  %s5 = inlined_call_operand.vmem [shape: f32[4,256], index: 5, kind: input, shape index: {}]
  %s6 = inlined_call_operand.vmem [shape: f32[4,256], index: 6, kind: input, shape index: {}]
  %s7 = inlined_call_operand.vmem [shape: f32[4,256], index: 7, kind: input, shape index: {}]
  %s8 = inlined_call_operand.vmem [shape: f32[1,256], index: 8, kind: input, shape index: {}]
  %s9 = inlined_call_operand.hbm [shape: f32[2,4,1,256], index: 9, kind: output, shape index: {}]
  %s10 = sld [smem:[#allocation0]]
  $region73: #{tpu_custom_call.1} parent=0
    _
  %s12 = ssub.s32 1, %s10
  %s13 = scalar_select 0, %s12, %s10
  $region1: #{tpu_custom_call.1} parent=0
    #allocation2 [shape = 'u8[2048]{0}', space=smem, size = 0x800, scoped, tag = 'input window, operand 0, single buffered']
    #allocation3 [shape = 's32[2]{0}', space=sflag, size = 0x8, scoped, tag = 'scoped memory for tpu_custom_call.1']
    #allocation4 [shape = 's32[2]{0}', space=sflag, size = 0x8, scoped, tag = 'scoped memory for tpu_custom_call.1']
    #allocation5 [shape = 'u8[8192]{0}', space=vmem, size = 0x2000, scoped, tag = 'output window, operand 0']
    %14 = vsyncpa [#allocation4], 0
    %15 = vsyncpa [#allocation3], 0
    %s16 = scalar_lea.sflag [#allocation3], 1
    %17 = vsyncpa %s16, 0
    loop: start=0, step=1, limit=4
    $region2: #{tpu_custom_call.1} parent=1 // loop_pre_header
      _
    $region3: #{tpu_custom_call.1} parent=1 // loop_header
      %s19 = sphi 0, %s23
      %p20 = scmp.ge.s32.totalorder %s19, 4
      %s26 = sphi 0, %s38
      %s27 = sphi 0, %s34
      %s28 = sphi 0, %s26
      %s29 = sphi 0, %s27
      %s30 = sphi 0, %s28
      %s31 = sphi 0, %s29
      %s39 = sphi 0, %s39
      %s41 = sphi 0, %s39
      %s42 = sphi 0, %s41
      %s56 = sphi 0, %s42
      %s64 = sphi 0, %s66
      %s67 = sphi 0, %s64
      %s68 = sphi 0, %s67
      %s84 = sphi 0, %s68
      %s88 = sphi 0, %s88
      %s90 = sphi 0, %s88
      %s91 = sphi 0, %s90
      %s105 = sphi 0, %s91
      %s109 = sphi 0, %s109
      %s111 = sphi 0, %s109
      %s112 = sphi 0, %s111
      %s126 = sphi 0, %s112
      %s130 = sphi 0, %s130
      %s132 = sphi 0, %s130
      %s133 = sphi 0, %s132
      %s147 = sphi 0, %s133
      %s151 = sphi 0, %s151
      %s153 = sphi 0, %s151
      %s154 = sphi 0, %s153
      %s168 = sphi 0, %s154
      %s172 = sphi 0, %s172
      %s174 = sphi 0, %s172
      %s175 = sphi 0, %s174
      %s189 = sphi 0, %s175
      %s193 = sphi 0, %s193
      %s195 = sphi 0, %s193
      %s196 = sphi 0, %s195
      %s210 = sphi 0, %s196
      %s214 = sphi 0, %s214
      %s216 = sphi 0, %s214
      %s217 = sphi 0, %s216
      %s231 = sphi 0, %s217
      %s239 = sphi 0, %s241
      %s242 = sphi 0, %s239
      %s243 = sphi 0, %s242
      %s259 = sphi 0, %s243
    $region4: #{tpu_custom_call.1} parent=1 // loop_header_branch
      %22 = sbr.rel (%p20) target = $region8
    $region5: #{tpu_custom_call.1} parent=1 // loop_body
      %s24 = ssub.s32 %s19, 1
      %s25 = ssub.s32 %s19, 2
      %s32 = sadd.s32 1, %s27
      %p33 = scmp.ge.s32.totalorder %s32, 1
      %s34 = scalar_select %p33, 0, %s32
      %s35 = sadd.s32 1, %s26
      %s36 = scalar_select %p33, %s35, %s26
      %p37 = scmp.ge.s32.totalorder %s36, 2
      %s38 = scalar_select %p37, 0, %s36
      %s40 = sadd.s32 %s39, 1
      %p43 = scmp.eq.s32.totalorder %s19, 1
      %p44 = scmp.ne.s32.totalorder %s39, %s41
      %p45 = scmp.eq.s32.totalorder %s19, 0
      %p46 = por %p44, %p45
      %p47 = scmp.ne.s32.totalorder %s39, %s41
      %p48 = scmp.eq.s32.totalorder %s24, 1
      %p49 = por %p47, %p48
      %p50 = scmp.ne.s32.totalorder %s41, %s42
      %p51 = scmp.eq.s32.totalorder %s24, 0
      %p52 = por %p50, %p51
      %p53 = scmp.ne.s32.totalorder %s41, %s42
      %p54 = scmp.eq.s32.totalorder %s25, 1
      %p55 = por %p53, %p54
      %p57 = scmp.ne.s32.totalorder %s42, %s56
      %p58 = scmp.eq.s32.totalorder %s25, 0
      %p59 = por %p57, %p58
      %s60 = ssub.s32 %s26, %s38
      %s61 = ssub.s32 %s27, %s34
      %s62 = sor.u32 %s60, %s61
      %p63 = scmp.eq.s32.totalorder %s62, 0
      %s65 = sadd.s32 %s64, 1
      %s66 = scalar_select %p63, %s64, %s65
      %p69 = pneg %p63
      %p70 = scmp.eq.s32.totalorder %s19, 1
      %p71 = por %p69, %p70
      %p72 = scmp.ne.s32.totalorder %s64, %s67
      %p73 = scmp.eq.s32.totalorder %s19, 0
      %p74 = por %p72, %p73
      %p75 = scmp.ne.s32.totalorder %s64, %s67
      %p76 = scmp.eq.s32.totalorder %s24, 1
      %p77 = por %p75, %p76
      %p78 = scmp.ne.s32.totalorder %s67, %s68
      %p79 = scmp.eq.s32.totalorder %s24, 0
      %p80 = por %p78, %p79
      %p81 = scmp.ne.s32.totalorder %s67, %s68
      %p82 = scmp.eq.s32.totalorder %s25, 1
      %p83 = por %p81, %p82
      %p85 = scmp.ne.s32.totalorder %s68, %s84
      %p86 = scmp.eq.s32.totalorder %s25, 0
      %p87 = por %p85, %p86
      %s89 = sadd.s32 %s88, 1
      %p92 = scmp.eq.s32.totalorder %s19, 1
      %p93 = scmp.ne.s32.totalorder %s88, %s90
      %p94 = scmp.eq.s32.totalorder %s19, 0
      %p95 = por %p93, %p94
      %p96 = scmp.ne.s32.totalorder %s88, %s90
      %p97 = scmp.eq.s32.totalorder %s24, 1
      %p98 = por %p96, %p97
      %p99 = scmp.ne.s32.totalorder %s90, %s91
      %p100 = scmp.eq.s32.totalorder %s24, 0
      %p101 = por %p99, %p100
      %p102 = scmp.ne.s32.totalorder %s90, %s91
      %p103 = scmp.eq.s32.totalorder %s25, 1
      %p104 = por %p102, %p103
      %p106 = scmp.ne.s32.totalorder %s91, %s105
      %p107 = scmp.eq.s32.totalorder %s25, 0
      %p108 = por %p106, %p107
      %s110 = sadd.s32 %s109, 1
      %p113 = scmp.eq.s32.totalorder %s19, 1
      %p114 = scmp.ne.s32.totalorder %s109, %s111
      %p115 = scmp.eq.s32.totalorder %s19, 0
      %p116 = por %p114, %p115
      %p117 = scmp.ne.s32.totalorder %s109, %s111
      %p118 = scmp.eq.s32.totalorder %s24, 1
      %p119 = por %p117, %p118
      %p120 = scmp.ne.s32.totalorder %s111, %s112
      %p121 = scmp.eq.s32.totalorder %s24, 0
      %p122 = por %p120, %p121
      %p123 = scmp.ne.s32.totalorder %s111, %s112
      %p124 = scmp.eq.s32.totalorder %s25, 1
      %p125 = por %p123, %p124
      %p127 = scmp.ne.s32.totalorder %s112, %s126
      %p128 = scmp.eq.s32.totalorder %s25, 0
      %p129 = por %p127, %p128
      %s131 = sadd.s32 %s130, 1
      %p134 = scmp.eq.s32.totalorder %s19, 1
      %p135 = scmp.ne.s32.totalorder %s130, %s132
      %p136 = scmp.eq.s32.totalorder %s19, 0
      %p137 = por %p135, %p136
      %p138 = scmp.ne.s32.totalorder %s130, %s132
      %p139 = scmp.eq.s32.totalorder %s24, 1
      %p140 = por %p138, %p139
      %p141 = scmp.ne.s32.totalorder %s132, %s133
      %p142 = scmp.eq.s32.totalorder %s24, 0
      %p143 = por %p141, %p142
      %p144 = scmp.ne.s32.totalorder %s132, %s133
      %p145 = scmp.eq.s32.totalorder %s25, 1
      %p146 = por %p144, %p145
      %p148 = scmp.ne.s32.totalorder %s133, %s147
      %p149 = scmp.eq.s32.totalorder %s25, 0
      %p150 = por %p148, %p149
      %s152 = sadd.s32 %s151, 1
      %p155 = scmp.eq.s32.totalorder %s19, 1
      %p156 = scmp.ne.s32.totalorder %s151, %s153
      %p157 = scmp.eq.s32.totalorder %s19, 0
      %p158 = por %p156, %p157
      %p159 = scmp.ne.s32.totalorder %s151, %s153
      %p160 = scmp.eq.s32.totalorder %s24, 1
      %p161 = por %p159, %p160
      %p162 = scmp.ne.s32.totalorder %s153, %s154
      %p163 = scmp.eq.s32.totalorder %s24, 0
      %p164 = por %p162, %p163
      %p165 = scmp.ne.s32.totalorder %s153, %s154
      %p166 = scmp.eq.s32.totalorder %s25, 1
      %p167 = por %p165, %p166
      %p169 = scmp.ne.s32.totalorder %s154, %s168
      %p170 = scmp.eq.s32.totalorder %s25, 0
      %p171 = por %p169, %p170
      %s173 = sadd.s32 %s172, 1
      %p176 = scmp.eq.s32.totalorder %s19, 1
      %p177 = scmp.ne.s32.totalorder %s172, %s174
      %p178 = scmp.eq.s32.totalorder %s19, 0
      %p179 = por %p177, %p178
      %p180 = scmp.ne.s32.totalorder %s172, %s174
      %p181 = scmp.eq.s32.totalorder %s24, 1
      %p182 = por %p180, %p181
      %p183 = scmp.ne.s32.totalorder %s174, %s175
      %p184 = scmp.eq.s32.totalorder %s24, 0
      %p185 = por %p183, %p184
      %p186 = scmp.ne.s32.totalorder %s174, %s175
      %p187 = scmp.eq.s32.totalorder %s25, 1
      %p188 = por %p186, %p187
      %p190 = scmp.ne.s32.totalorder %s175, %s189
      %p191 = scmp.eq.s32.totalorder %s25, 0
      %p192 = por %p190, %p191
      %s194 = sadd.s32 %s193, 1
      %p197 = scmp.eq.s32.totalorder %s19, 1
      %p198 = scmp.ne.s32.totalorder %s193, %s195
      %p199 = scmp.eq.s32.totalorder %s19, 0
      %p200 = por %p198, %p199
      %p201 = scmp.ne.s32.totalorder %s193, %s195
      %p202 = scmp.eq.s32.totalorder %s24, 1
      %p203 = por %p201, %p202
      %p204 = scmp.ne.s32.totalorder %s195, %s196
      %p205 = scmp.eq.s32.totalorder %s24, 0
      %p206 = por %p204, %p205
      %p207 = scmp.ne.s32.totalorder %s195, %s196
      %p208 = scmp.eq.s32.totalorder %s25, 1
      %p209 = por %p207, %p208
      %p211 = scmp.ne.s32.totalorder %s196, %s210
      %p212 = scmp.eq.s32.totalorder %s25, 0
      %p213 = por %p211, %p212
      %s215 = sadd.s32 %s214, 1
      %p218 = scmp.eq.s32.totalorder %s19, 1
      %p219 = scmp.ne.s32.totalorder %s214, %s216
      %p220 = scmp.eq.s32.totalorder %s19, 0
      %p221 = por %p219, %p220
      %p222 = scmp.ne.s32.totalorder %s214, %s216
      %p223 = scmp.eq.s32.totalorder %s24, 1
      %p224 = por %p222, %p223
      %p225 = scmp.ne.s32.totalorder %s216, %s217
      %p226 = scmp.eq.s32.totalorder %s24, 0
      %p227 = por %p225, %p226
      %p228 = scmp.ne.s32.totalorder %s216, %s217
      %p229 = scmp.eq.s32.totalorder %s25, 1
      %p230 = por %p228, %p229
      %p232 = scmp.ne.s32.totalorder %s217, %s231
      %p233 = scmp.eq.s32.totalorder %s25, 0
      %p234 = por %p232, %p233
      %s235 = ssub.s32 %s26, %s38
      %s236 = ssub.s32 %s27, %s34
      %s237 = sor.u32 %s235, %s236
      %p238 = scmp.eq.s32.totalorder %s237, 0
      %s240 = sadd.s32 %s239, 1
      %s241 = scalar_select %p238, %s239, %s240
      %p244 = pneg %p238
      %p245 = scmp.eq.s32.totalorder %s19, 1
      %p246 = por %p244, %p245
      %p247 = scmp.ne.s32.totalorder %s239, %s242
      %p248 = scmp.eq.s32.totalorder %s19, 0
      %p249 = por %p247, %p248
      %p250 = scmp.ne.s32.totalorder %s239, %s242
      %p251 = scmp.eq.s32.totalorder %s24, 1
      %p252 = por %p250, %p251
      %p253 = scmp.ne.s32.totalorder %s242, %s243
      %p254 = scmp.eq.s32.totalorder %s24, 0
      %p255 = por %p253, %p254
      %p256 = scmp.ne.s32.totalorder %s242, %s243
      %p257 = scmp.eq.s32.totalorder %s25, 1
      %p258 = por %p256, %p257
      %p260 = scmp.ne.s32.totalorder %s243, %s259
      %p261 = scmp.eq.s32.totalorder %s25, 0
      %p262 = por %p260, %p261
      %p263 = scmp.le.s32.totalorder 1, %s19
      %p264 = scmp.lt.s32.totalorder %s19, 3
      %p265 = pnand %p263, %p264
      %p266 = pneg %p265
      // Predicated region
      $region9: #{tpu_custom_call.1} parent=5 // pred_check
        _
      $region10: #{tpu_custom_call.1} parent=5 // pred_check_branch
        %268 = sbr.rel (%p265) target = $region12
      $region11: #{tpu_custom_call.1} parent=5 // pred_region
        %s269 = ssub.s32 %s19, 1
        // Predicated region
        $region13: #{tpu_custom_call.1} parent=11 // pred_check
          %p270 = pneg %p52
        $region14: #{tpu_custom_call.1} parent=11 // pred_check_branch
          %272 = sbr.rel (%p270) target = $region16
        $region15: #{tpu_custom_call.1} parent=11 // pred_region
          %s274 = ssub.s32 64, 64
          %275 = vsyncadd [#allocation4], %s274
          %s277 = sshll.u32 %s0, 4
          %s278 = int_to_ptr.vmem [resolvable:$true] %s277
          %280 = dma.vmem_to_smem %s278, 64, [#allocation2], [#allocation4]
        $region16: #{tpu_custom_call.1} parent=11 // pred_fallthru
          _
        // Predicated region
        $region17: #{tpu_custom_call.1} parent=11 // pred_check
          %p281 = pneg %p101
        $region18: #{tpu_custom_call.1} parent=11 // pred_check_branch
          %283 = sbr.rel (%p281) target = $region20
        $region19: #{tpu_custom_call.1} parent=11 // pred_region
          _
        $region20: #{tpu_custom_call.1} parent=11 // pred_fallthru
          _
        // Predicated region
        $region21: #{tpu_custom_call.1} parent=11 // pred_check
          %p284 = pneg %p122
        $region22: #{tpu_custom_call.1} parent=11 // pred_check_branch
          %286 = sbr.rel (%p284) target = $region24
        $region23: #{tpu_custom_call.1} parent=11 // pred_region
          _
        $region24: #{tpu_custom_call.1} parent=11 // pred_fallthru
          _
        // Predicated region
        $region25: #{tpu_custom_call.1} parent=11 // pred_check
          %p287 = pneg %p143
        $region26: #{tpu_custom_call.1} parent=11 // pred_check_branch
          %289 = sbr.rel (%p287) target = $region28
        $region27: #{tpu_custom_call.1} parent=11 // pred_region
          _
        $region28: #{tpu_custom_call.1} parent=11 // pred_fallthru
          _
        // Predicated region
        $region29: #{tpu_custom_call.1} parent=11 // pred_check
          %p290 = pneg %p164
        $region30: #{tpu_custom_call.1} parent=11 // pred_check_branch
          %292 = sbr.rel (%p290) target = $region32
        $region31: #{tpu_custom_call.1} parent=11 // pred_region
          _
        $region32: #{tpu_custom_call.1} parent=11 // pred_fallthru
          _
        // Predicated region
        $region33: #{tpu_custom_call.1} parent=11 // pred_check
          %p293 = pneg %p185
        $region34: #{tpu_custom_call.1} parent=11 // pred_check_branch
          %295 = sbr.rel (%p293) target = $region36
        $region35: #{tpu_custom_call.1} parent=11 // pred_region
          _
        $region36: #{tpu_custom_call.1} parent=11 // pred_fallthru
          _
        // Predicated region
        $region37: #{tpu_custom_call.1} parent=11 // pred_check
          %p296 = pneg %p206
        $region38: #{tpu_custom_call.1} parent=11 // pred_check_branch
          %298 = sbr.rel (%p296) target = $region40
        $region39: #{tpu_custom_call.1} parent=11 // pred_region
          _
        $region40: #{tpu_custom_call.1} parent=11 // pred_fallthru
          _
        // Predicated region
        $region41: #{tpu_custom_call.1} parent=11 // pred_check
          %p299 = pneg %p227
        $region42: #{tpu_custom_call.1} parent=11 // pred_check_branch
          %301 = sbr.rel (%p299) target = $region44
        $region43: #{tpu_custom_call.1} parent=11 // pred_region
          _
        $region44: #{tpu_custom_call.1} parent=11 // pred_fallthru
          _
      $region12: #{tpu_custom_call.1} parent=5 // pred_fallthru
        _
      %p302 = scmp.lt.s32.totalorder %s19, 2
      // Predicated region
      $region45: #{tpu_custom_call.1} parent=5 // pred_check
        %p303 = pneg %p302
      $region46: #{tpu_custom_call.1} parent=5 // pred_check_branch
        %305 = sbr.rel (%p303) target = $region48
      $region47: #{tpu_custom_call.1} parent=5 // pred_region
        // Predicated region
        $region49: #{tpu_custom_call.1} parent=47 // pred_check
          %p306 = pneg %p74
        $region50: #{tpu_custom_call.1} parent=47 // pred_check_branch
          %308 = sbr.rel (%p306) target = $region52
        $region51: #{tpu_custom_call.1} parent=47 // pred_region
          %p309 = scmp.lt.s32.totalorder %s26, 1
          %s310 = scalar_select %p309, %s26, 1
          %p311 = scmp.lt.s32.totalorder %s27, 0
          %s312 = scalar_select %p311, %s27, 0
          %s313 = smul.addr %s310, 4
          %s314 = sadd.s32 %s312, %s313
          %s315 = scalar_lea.vmem %s1, %s314
        $region52: #{tpu_custom_call.1} parent=47 // pred_fallthru
          _
      $region48: #{tpu_custom_call.1} parent=5 // pred_fallthru
        _
      %p316 = scmp.le.s32.totalorder 1, %s19
      %p317 = scmp.lt.s32.totalorder %s19, 3
      %p318 = pnand %p316, %p317
      %p319 = pneg %p318
      // Predicated region
      $region53: #{tpu_custom_call.1} parent=5 // pred_check
        _
      $region54: #{tpu_custom_call.1} parent=5 // pred_check_branch
        %321 = sbr.rel (%p318) target = $region56
      $region55: #{tpu_custom_call.1} parent=5 // pred_region
        %s322 = ssub.s32 %s19, 1
        // Predicated region
        $region57: #{tpu_custom_call.1} parent=55 // pred_check
          %p323 = pneg %p52
        $region58: #{tpu_custom_call.1} parent=55 // pred_check_branch
          %325 = sbr.rel (%p323) target = $region60
        $region59: #{tpu_custom_call.1} parent=55 // pred_region
          %326 = dma.done [#allocation4], 64
        $region60: #{tpu_custom_call.1} parent=55 // pred_fallthru
          _
        %327 = sfence
        %p328 = pneg %p52
        %p329 = pneg %p49
        %p330 = scmp.lt.s32.totalorder %s28, 1
        %s331 = scalar_select %p330, %s28, 1
        %p332 = scmp.lt.s32.totalorder %s29, 0
        %s333 = scalar_select %p332, %s29, 0
        %s334 = smul.addr %s331, 4
        %s335 = sadd.s32 %s333, %s334
        %s336 = scalar_lea.vmem %s1, %s335
        %p337 = pneg %p80
        %p338 = pneg %p77
        %p339 = pneg %p101
        %p340 = pneg %p98
        %p341 = pneg %p122
        %p342 = pneg %p119
        %p343 = pneg %p143
        %p344 = pneg %p140
        %p345 = pneg %p164
        %p346 = pneg %p161
        %p347 = pneg %p185
        %p348 = pneg %p182
        %p349 = pneg %p206
        %p350 = pneg %p203
        %p351 = pneg %p227
        %p352 = pneg %p224
        %p353 = pneg %p255
        %p354 = pneg %p252
        %s355 = sand.u32 %s242, 1
        %s356 = scalar_lea.sflag [#allocation3], %s355
        %s357 = sand.u32 %s242, 1
        %s358 = smul.addr %s357, 8
        %s359 = scalar_lea.vmem [#allocation5], %s358
        %p360 = scmp.lt.s32.totalorder %s28, 1
        %s361 = scalar_select %p360, %s28, 1
        %p362 = scmp.lt.s32.totalorder %s29, 0
        %s363 = scalar_select %p362, %s29, 0
        %s364 = smul.addr %s361, 4
        %s365 = sadd.s32 %s363, %s364
        %s366 = scalar_lea.vmem %s1, %s365
        %v367 = vld [vmem:[%s2] sm:$0xff]
        %v368 = vld [vmem:[%s2 + $0x8] sm:$0xff]
        %v369 = vld [vmem:[%s2 + $0x10] sm:$0xff]
        %v370 = vld [vmem:[%s2 + $0x18] sm:$0xff]
        %v371 = vld [vmem:[%s2 + $0x20] sm:$0xff]
        %v372 = vld [vmem:[%s2 + $0x28] sm:$0xff]
        %v373 = vld [vmem:[%s2 + $0x30] sm:$0xff]
        %v374 = vld [vmem:[%s2 + $0x38] sm:$0xff]
        %v375 = vld [vmem:[%s366] sm:$0x1]
        %vm376 = vcmask 261120
        %v378 = vsel %vm376, %v375, 0
        %380 = vmatprep.subr.mxu0 0.0
        %381 = vmatpush1.msra.mxu0 0.0
        %382 = vmatprep.subr.mxu0 0.0
        %383 = vmatpush1.msra.mxu0 0.0
        %384 = vmatprep.subr.mxu0 0.0
        %385 = vmatpush1.msra.mxu0 0.0
        %386 = vmatprep.subr.mxu0 0.0
        %387 = vmatpush1.msra.mxu0 0.0
        %388 = vmatprep.subr.mxu0 0.0
        %389 = vmatpush1.msra.mxu0 0.0
        %390 = vmatprep.subr.mxu0 0.0
        %391 = vmatpush1.msra.mxu0 0.0
        %392 = vmatprep.subr.mxu0 0.0
        %393 = vmatpush1.msra.mxu0 0.0
        %394 = vmatprep.subr.mxu0 0.0
        %395 = vmatpush1.msra.mxu0 0.0
        %396 = vmatprep.subr.mxu0 0.0
        %397 = vmatpush1.msra.mxu0 0.0
        %398 = vmatprep.subr.mxu0 0.0
        %399 = vmatpush1.msra.mxu0 0.0
        %400 = vmatprep.subr.mxu0 0.0
        %401 = vmatpush1.msra.mxu0 0.0
        %402 = vmatprep.subr.mxu0 0.0
        %403 = vmatpush1.msra.mxu0 0.0
        %404 = vmatprep.subr.mxu0 %v374
        %405 = vmatpush1.msra.mxu0 %v373
        %406 = vmatprep.subr.mxu0 %v372
        %407 = vmatpush1.msra.mxu0 %v371
        %408 = vmatprep.subr.mxu0 %v370
        %409 = vmatpush1.msra.mxu0 %v369
        %410 = vmatprep.subr.mxu0 %v368
        %411 = vmatpush1.msra.mxu0 %v367
        %412 = vmatprep.subr.mxu0 0.0
        %413 = vmatpush2.msra.mxu0 0.0
        %414 = vmatprep.subr.mxu0 0.0
        %415 = vmatpush2.msra.mxu0 0.0
        %416 = vmatprep.subr.mxu0 0.0
        %417 = vmatpush2.msra.mxu0 0.0
        %418 = vmatprep.subr.mxu0 0.0
        %419 = vmatpush2.msra.mxu0 0.0
        %420 = vmatprep.subr.mxu0 0.0
        %421 = vmatpush2.msra.mxu0 0.0
        %422 = vmatprep.subr.mxu0 0.0
        %423 = vmatpush2.msra.mxu0 0.0
        %424 = vmatprep.subr.mxu0 0.0
        %425 = vmatpush2.msra.mxu0 0.0
        %426 = vmatprep.subr.mxu0 0.0
        %427 = vmatpush2.msra.mxu0 0.0
        %428 = vmatprep.subr.mxu0 0.0
        %429 = vmatpush2.msra.mxu0 0.0
        %430 = vmatprep.subr.mxu0 0.0
        %431 = vmatpush2.msra.mxu0 0.0
        %432 = vmatprep.subr.mxu0 0.0
        %433 = vmatpush2.msra.mxu0 0.0
        %434 = vmatprep.subr.mxu0 0.0
        %435 = vmatpush2.msra.mxu0 0.0
        %436 = vmatprep.subr.mxu0 0.0
        %437 = vmatpush2.msra.mxu0 0.0
        %438 = vmatprep.subr.mxu0 0.0
        %439 = vmatpush2.msra.mxu0 0.0
        %440 = vmatprep.subr.mxu0 0.0
        %441 = vmatpush2.msra.mxu0 0.0
        %442 = vmatprep.subr.mxu0 0.0
        %443 = vmatpush2.msra.mxu0 0.0
        %444 = vmatprep.mubr.f32.mxu0 0.0
        %445 = vmatmul.mubr.f32.gmra.mxu0 %v378
        %v446 = vpop.f32.mrf.mxu0
        %v447 = vadd.f32 0.0, %v446
        %v448 = vpop.f32.mrf.mxu0
        %v449 = vadd.f32 0.0, %v448
        %450 = vdwg.mxu0
        %s451 = scalar_lea.vmem %s366, 1
        %v452 = vld [vmem:[%s451] sm:$0x1]
        %v454 = vsel %vm376, %v452, 0
        %456 = vmatprep.subr.mxu0 0.0
        %457 = vmatpush1.msra.mxu0 0.0
        %458 = vmatprep.subr.mxu0 0.0
        %459 = vmatpush1.msra.mxu0 0.0
        %460 = vmatprep.subr.mxu0 0.0
        %461 = vmatpush1.msra.mxu0 0.0
        %462 = vmatprep.subr.mxu0 0.0
        %463 = vmatpush1.msra.mxu0 0.0
        %464 = vmatprep.subr.mxu0 0.0
        %465 = vmatpush1.msra.mxu0 0.0
        %466 = vmatprep.subr.mxu0 0.0
        %467 = vmatpush1.msra.mxu0 0.0
        %468 = vmatprep.subr.mxu0 0.0
        %469 = vmatpush1.msra.mxu0 0.0
        %470 = vmatprep.subr.mxu0 0.0
        %471 = vmatpush1.msra.mxu0 0.0
        %472 = vmatprep.subr.mxu0 0.0
        %473 = vmatpush1.msra.mxu0 0.0
        %474 = vmatprep.subr.mxu0 0.0
        %475 = vmatpush1.msra.mxu0 0.0
        %476 = vmatprep.subr.mxu0 0.0
        %477 = vmatpush1.msra.mxu0 0.0
        %478 = vmatprep.subr.mxu0 0.0
        %479 = vmatpush1.msra.mxu0 0.0
        %480 = vmatprep.subr.mxu0 %v374
        %481 = vmatpush1.msra.mxu0 %v373
        %482 = vmatprep.subr.mxu0 %v372
        %483 = vmatpush1.msra.mxu0 %v371
        %484 = vmatprep.subr.mxu0 %v370
        %485 = vmatpush1.msra.mxu0 %v369
        %486 = vmatprep.subr.mxu0 %v368
        %487 = vmatpush1.msra.mxu0 %v367
        %488 = vmatprep.subr.mxu0 0.0
        %489 = vmatpush2.msra.mxu0 0.0
        %490 = vmatprep.subr.mxu0 0.0
        %491 = vmatpush2.msra.mxu0 0.0
        %492 = vmatprep.subr.mxu0 0.0
        %493 = vmatpush2.msra.mxu0 0.0
        %494 = vmatprep.subr.mxu0 0.0
        %495 = vmatpush2.msra.mxu0 0.0
        %496 = vmatprep.subr.mxu0 0.0
        %497 = vmatpush2.msra.mxu0 0.0
        %498 = vmatprep.subr.mxu0 0.0
        %499 = vmatpush2.msra.mxu0 0.0
        %500 = vmatprep.subr.mxu0 0.0
        %501 = vmatpush2.msra.mxu0 0.0
        %502 = vmatprep.subr.mxu0 0.0
        %503 = vmatpush2.msra.mxu0 0.0
        %504 = vmatprep.subr.mxu0 0.0
        %505 = vmatpush2.msra.mxu0 0.0
        %506 = vmatprep.subr.mxu0 0.0
        %507 = vmatpush2.msra.mxu0 0.0
        %508 = vmatprep.subr.mxu0 0.0
        %509 = vmatpush2.msra.mxu0 0.0
        %510 = vmatprep.subr.mxu0 0.0
        %511 = vmatpush2.msra.mxu0 0.0
        %512 = vmatprep.subr.mxu0 0.0
        %513 = vmatpush2.msra.mxu0 0.0
        %514 = vmatprep.subr.mxu0 0.0
        %515 = vmatpush2.msra.mxu0 0.0
        %516 = vmatprep.subr.mxu0 0.0
        %517 = vmatpush2.msra.mxu0 0.0
        %518 = vmatprep.subr.mxu0 0.0
        %519 = vmatpush2.msra.mxu0 0.0
        %520 = vmatprep.mubr.f32.mxu0 0.0
        %521 = vmatmul.mubr.f32.gmra.mxu0 %v454
        %v522 = vpop.f32.mrf.mxu0
        %v523 = vadd.f32 0.0, %v522
        %v524 = vpop.f32.mrf.mxu0
        %v525 = vadd.f32 0.0, %v524
        %526 = vdwg.mxu0
        %s527 = scalar_lea.vmem %s366, 2
        %v528 = vld [vmem:[%s527] sm:$0x1]
        %v530 = vsel %vm376, %v528, 0
        %532 = vmatprep.subr.mxu0 0.0
        %533 = vmatpush1.msra.mxu0 0.0
        %534 = vmatprep.subr.mxu0 0.0
        %535 = vmatpush1.msra.mxu0 0.0
        %536 = vmatprep.subr.mxu0 0.0
        %537 = vmatpush1.msra.mxu0 0.0
        %538 = vmatprep.subr.mxu0 0.0
        %539 = vmatpush1.msra.mxu0 0.0
        %540 = vmatprep.subr.mxu0 0.0
        %541 = vmatpush1.msra.mxu0 0.0
        %542 = vmatprep.subr.mxu0 0.0
        %543 = vmatpush1.msra.mxu0 0.0
        %544 = vmatprep.subr.mxu0 0.0
        %545 = vmatpush1.msra.mxu0 0.0
        %546 = vmatprep.subr.mxu0 0.0
        %547 = vmatpush1.msra.mxu0 0.0
        %548 = vmatprep.subr.mxu0 0.0
        %549 = vmatpush1.msra.mxu0 0.0
        %550 = vmatprep.subr.mxu0 0.0
        %551 = vmatpush1.msra.mxu0 0.0
        %552 = vmatprep.subr.mxu0 0.0
        %553 = vmatpush1.msra.mxu0 0.0
        %554 = vmatprep.subr.mxu0 0.0
        %555 = vmatpush1.msra.mxu0 0.0
        %556 = vmatprep.subr.mxu0 %v374
        %557 = vmatpush1.msra.mxu0 %v373
        %558 = vmatprep.subr.mxu0 %v372
        %559 = vmatpush1.msra.mxu0 %v371
        %560 = vmatprep.subr.mxu0 %v370
        %561 = vmatpush1.msra.mxu0 %v369
        %562 = vmatprep.subr.mxu0 %v368
        %563 = vmatpush1.msra.mxu0 %v367
        %564 = vmatprep.subr.mxu0 0.0
        %565 = vmatpush2.msra.mxu0 0.0
        %566 = vmatprep.subr.mxu0 0.0
        %567 = vmatpush2.msra.mxu0 0.0
        %568 = vmatprep.subr.mxu0 0.0
        %569 = vmatpush2.msra.mxu0 0.0
        %570 = vmatprep.subr.mxu0 0.0
        %571 = vmatpush2.msra.mxu0 0.0
        %572 = vmatprep.subr.mxu0 0.0
        %573 = vmatpush2.msra.mxu0 0.0
        %574 = vmatprep.subr.mxu0 0.0
        %575 = vmatpush2.msra.mxu0 0.0
        %576 = vmatprep.subr.mxu0 0.0
        %577 = vmatpush2.msra.mxu0 0.0
        %578 = vmatprep.subr.mxu0 0.0
        %579 = vmatpush2.msra.mxu0 0.0
        %580 = vmatprep.subr.mxu0 0.0
        %581 = vmatpush2.msra.mxu0 0.0
        %582 = vmatprep.subr.mxu0 0.0
        %583 = vmatpush2.msra.mxu0 0.0
        %584 = vmatprep.subr.mxu0 0.0
        %585 = vmatpush2.msra.mxu0 0.0
        %586 = vmatprep.subr.mxu0 0.0
        %587 = vmatpush2.msra.mxu0 0.0
        %588 = vmatprep.subr.mxu0 0.0
        %589 = vmatpush2.msra.mxu0 0.0
        %590 = vmatprep.subr.mxu0 0.0
        %591 = vmatpush2.msra.mxu0 0.0
        %592 = vmatprep.subr.mxu0 0.0
        %593 = vmatpush2.msra.mxu0 0.0
        %594 = vmatprep.subr.mxu0 0.0
        %595 = vmatpush2.msra.mxu0 0.0
        %596 = vmatprep.mubr.f32.mxu0 0.0
        %597 = vmatmul.mubr.f32.gmra.mxu0 %v530
        %v598 = vpop.f32.mrf.mxu0
        %v599 = vadd.f32 0.0, %v598
        %v600 = vpop.f32.mrf.mxu0
        %v601 = vadd.f32 0.0, %v600
        %602 = vdwg.mxu0
        %s603 = scalar_lea.vmem %s366, 3
        %v604 = vld [vmem:[%s603] sm:$0x1]
        %v606 = vsel %vm376, %v604, 0
        %608 = vmatprep.subr.mxu0 0.0
        %609 = vmatpush1.msra.mxu0 0.0
        %610 = vmatprep.subr.mxu0 0.0
        %611 = vmatpush1.msra.mxu0 0.0
        %612 = vmatprep.subr.mxu0 0.0
        %613 = vmatpush1.msra.mxu0 0.0
        %614 = vmatprep.subr.mxu0 0.0
        %615 = vmatpush1.msra.mxu0 0.0
        %616 = vmatprep.subr.mxu0 0.0
        %617 = vmatpush1.msra.mxu0 0.0
        %618 = vmatprep.subr.mxu0 0.0
        %619 = vmatpush1.msra.mxu0 0.0
        %620 = vmatprep.subr.mxu0 0.0
        %621 = vmatpush1.msra.mxu0 0.0
        %622 = vmatprep.subr.mxu0 0.0
        %623 = vmatpush1.msra.mxu0 0.0
        %624 = vmatprep.subr.mxu0 0.0
        %625 = vmatpush1.msra.mxu0 0.0
        %626 = vmatprep.subr.mxu0 0.0
        %627 = vmatpush1.msra.mxu0 0.0
        %628 = vmatprep.subr.mxu0 0.0
        %629 = vmatpush1.msra.mxu0 0.0
        %630 = vmatprep.subr.mxu0 0.0
        %631 = vmatpush1.msra.mxu0 0.0
        %632 = vmatprep.subr.mxu0 %v374
        %633 = vmatpush1.msra.mxu0 %v373
        %634 = vmatprep.subr.mxu0 %v372
        %635 = vmatpush1.msra.mxu0 %v371
        %636 = vmatprep.subr.mxu0 %v370
        %637 = vmatpush1.msra.mxu0 %v369
        %638 = vmatprep.subr.mxu0 %v368
        %639 = vmatpush1.msra.mxu0 %v367
        %640 = vmatprep.subr.mxu0 0.0
        %641 = vmatpush2.msra.mxu0 0.0
        %642 = vmatprep.subr.mxu0 0.0
        %643 = vmatpush2.msra.mxu0 0.0
        %644 = vmatprep.subr.mxu0 0.0
        %645 = vmatpush2.msra.mxu0 0.0
        %646 = vmatprep.subr.mxu0 0.0
        %647 = vmatpush2.msra.mxu0 0.0
        %648 = vmatprep.subr.mxu0 0.0
        %649 = vmatpush2.msra.mxu0 0.0
        %650 = vmatprep.subr.mxu0 0.0
        %651 = vmatpush2.msra.mxu0 0.0
        %652 = vmatprep.subr.mxu0 0.0
        %653 = vmatpush2.msra.mxu0 0.0
        %654 = vmatprep.subr.mxu0 0.0
        %655 = vmatpush2.msra.mxu0 0.0
        %656 = vmatprep.subr.mxu0 0.0
        %657 = vmatpush2.msra.mxu0 0.0
        %658 = vmatprep.subr.mxu0 0.0
        %659 = vmatpush2.msra.mxu0 0.0
        %660 = vmatprep.subr.mxu0 0.0
        %661 = vmatpush2.msra.mxu0 0.0
        %662 = vmatprep.subr.mxu0 0.0
        %663 = vmatpush2.msra.mxu0 0.0
        %664 = vmatprep.subr.mxu0 0.0
        %665 = vmatpush2.msra.mxu0 0.0
        %666 = vmatprep.subr.mxu0 0.0
        %667 = vmatpush2.msra.mxu0 0.0
        %668 = vmatprep.subr.mxu0 0.0
        %669 = vmatpush2.msra.mxu0 0.0
        %670 = vmatprep.subr.mxu0 0.0
        %671 = vmatpush2.msra.mxu0 0.0
        %672 = vmatprep.mubr.f32.mxu0 0.0
        %673 = vmatmul.mubr.f32.gmra.mxu0 %v606
        %v674 = vpop.f32.mrf.mxu0
        %v675 = vadd.f32 0.0, %v674
        %v676 = vpop.f32.mrf.mxu0
        %v677 = vadd.f32 0.0, %v676
        %678 = vdwg.mxu0
        %v679 = vld [vmem:[%s8] sm:$0x3]
        %v681 = vlaneseq
        %v682 = vshrl.u32 %v681, 7
        %v683 = vsub.s32 0, %v682
        %v684 = vrot.slane %v679, %v683
        %v685 = vlaneseq
        %v686 = vshrl.u32 %v685, 7
        %v687 = vsub.s32 1, %v686
        %v688 = vrot.slane %v679, %v687
        %v691 = vadd.f32 %v447, %v684
        %v692 = vadd.f32 %v449, %v688
        %v693 = vmul.f32 %v691, %v691
        %v694 = vmul.f32 %v692, %v692
        %v695 = vld [vmem:[%s4] sm:$0xff]
        %v696 = vld [vmem:[%s4 + $0x8] sm:$0xff]
        %v697 = vld [vmem:[%s4 + $0x10] sm:$0xff]
        %v698 = vld [vmem:[%s4 + $0x18] sm:$0xff]
        %v699 = vld [vmem:[%s4 + $0x20] sm:$0xff]
        %v700 = vld [vmem:[%s4 + $0x28] sm:$0xff]
        %v701 = vld [vmem:[%s4 + $0x30] sm:$0xff]
        %v702 = vld [vmem:[%s4 + $0x38] sm:$0xff]
        %v703 = vld [vmem:[%s4 + $0x40] sm:$0xff]
        %v704 = vld [vmem:[%s4 + $0x48] sm:$0xff]
        %v705 = vld [vmem:[%s4 + $0x50] sm:$0xff]
        %v706 = vld [vmem:[%s4 + $0x58] sm:$0xff]
        %v707 = vld [vmem:[%s4 + $0x60] sm:$0xff]
        %v708 = vld [vmem:[%s4 + $0x68] sm:$0xff]
        %v709 = vld [vmem:[%s4 + $0x70] sm:$0xff]
        %v710 = vld [vmem:[%s4 + $0x78] sm:$0xff]
        %v711 = vld [vmem:[%s4 + $0x80] sm:$0xff]
        %v712 = vld [vmem:[%s4 + $0x88] sm:$0xff]
        %v713 = vld [vmem:[%s4 + $0x90] sm:$0xff]
        %v714 = vld [vmem:[%s4 + $0x98] sm:$0xff]
        %v715 = vld [vmem:[%s4 + $0xa0] sm:$0xff]
        %v716 = vld [vmem:[%s4 + $0xa8] sm:$0xff]
        %v717 = vld [vmem:[%s4 + $0xb0] sm:$0xff]
        %v718 = vld [vmem:[%s4 + $0xb8] sm:$0xff]
        %v719 = vld [vmem:[%s4 + $0xc0] sm:$0xff]
        %v720 = vld [vmem:[%s4 + $0xc8] sm:$0xff]
        %v721 = vld [vmem:[%s4 + $0xd0] sm:$0xff]
        %v722 = vld [vmem:[%s4 + $0xd8] sm:$0xff]
        %v723 = vld [vmem:[%s4 + $0xe0] sm:$0xff]
        %v724 = vld [vmem:[%s4 + $0xe8] sm:$0xff]
        %v725 = vld [vmem:[%s4 + $0xf0] sm:$0xff]
        %v726 = vld [vmem:[%s4 + $0xf8] sm:$0xff]
        %727 = vmatprep.subr.mxu0 0.0
        %728 = vmatpush1.msra.mxu0 %v710
        %729 = vmatprep.subr.mxu0 0.0
        %730 = vmatpush1.msra.mxu0 %v709
        %731 = vmatprep.subr.mxu0 0.0
        %732 = vmatpush1.msra.mxu0 %v708
        %733 = vmatprep.subr.mxu0 0.0
        %734 = vmatpush1.msra.mxu0 %v707
        %735 = vmatprep.subr.mxu0 0.0
        %736 = vmatpush1.msra.mxu0 %v706
        %737 = vmatprep.subr.mxu0 0.0
        %738 = vmatpush1.msra.mxu0 %v705
        %739 = vmatprep.subr.mxu0 0.0
        %740 = vmatpush1.msra.mxu0 %v704
        %741 = vmatprep.subr.mxu0 0.0
        %742 = vmatpush1.msra.mxu0 %v703
        %743 = vmatprep.subr.mxu0 0.0
        %744 = vmatpush1.msra.mxu0 %v702
        %745 = vmatprep.subr.mxu0 0.0
        %746 = vmatpush1.msra.mxu0 %v701
        %747 = vmatprep.subr.mxu0 0.0
        %748 = vmatpush1.msra.mxu0 %v700
        %749 = vmatprep.subr.mxu0 0.0
        %750 = vmatpush1.msra.mxu0 %v699
        %751 = vmatprep.subr.mxu0 0.0
        %752 = vmatpush1.msra.mxu0 %v698
        %753 = vmatprep.subr.mxu0 0.0
        %754 = vmatpush1.msra.mxu0 %v697
        %755 = vmatprep.subr.mxu0 0.0
        %756 = vmatpush1.msra.mxu0 %v696
        %757 = vmatprep.subr.mxu0 0.0
        %758 = vmatpush1.msra.mxu0 %v695
        %759 = vmatprep.subr.mxu0 0.0
        %760 = vmatpush2.msra.mxu0 %v726
        %761 = vmatprep.subr.mxu0 0.0
        %762 = vmatpush2.msra.mxu0 %v725
        %763 = vmatprep.subr.mxu0 0.0
        %764 = vmatpush2.msra.mxu0 %v724
        %765 = vmatprep.subr.mxu0 0.0
        %766 = vmatpush2.msra.mxu0 %v723
        %767 = vmatprep.subr.mxu0 0.0
        %768 = vmatpush2.msra.mxu0 %v722
        %769 = vmatprep.subr.mxu0 0.0
        %770 = vmatpush2.msra.mxu0 %v721
        %771 = vmatprep.subr.mxu0 0.0
        %772 = vmatpush2.msra.mxu0 %v720
        %773 = vmatprep.subr.mxu0 0.0
        %774 = vmatpush2.msra.mxu0 %v719
        %775 = vmatprep.subr.mxu0 0.0
        %776 = vmatpush2.msra.mxu0 %v718
        %777 = vmatprep.subr.mxu0 0.0
        %778 = vmatpush2.msra.mxu0 %v717
        %779 = vmatprep.subr.mxu0 0.0
        %780 = vmatpush2.msra.mxu0 %v716
        %781 = vmatprep.subr.mxu0 0.0
        %782 = vmatpush2.msra.mxu0 %v715
        %783 = vmatprep.subr.mxu0 0.0
        %784 = vmatpush2.msra.mxu0 %v714
        %785 = vmatprep.subr.mxu0 0.0
        %786 = vmatpush2.msra.mxu0 %v713
        %787 = vmatprep.subr.mxu0 0.0
        %788 = vmatpush2.msra.mxu0 %v712
        %789 = vmatprep.subr.mxu0 0.0
        %790 = vmatpush2.msra.mxu0 %v711
        %791 = vmatprep.mubr.f32.mxu0 %v694
        %792 = vmatmul.mubr.f32.gmra.mxu0 %v693
        %v793 = vpop.f32.mrf.mxu0
        %v794 = vadd.f32 0.0, %v793
        %v795 = vpop.f32.mrf.mxu0
        %796 = vdwg.mxu0
        %v797 = vmul.f32 %v794, 0.03125
        %v798 = vadd.f32 %v797, 1e-05
        %v799 = vrsqrt.pop %v798
        %v800 = vld [vmem:[%s6] sm:$0xff]
        %v802 = vcombine.high %v800, %v800
        %vm803 = vcmask 31744
        %v805 = vsel %vm803, %v799, 0
        %vm807 = vcmask 1043456
        %v808 = vsel %vm807, %v800, 0
        %v810 = vsel %vm807, %v802, 0
        %812 = vmatprep.subr.mxu0 0.0
        %813 = vmatpush1.msra.mxu0 0.0
        %814 = vmatprep.subr.mxu0 0.0
        %815 = vmatpush1.msra.mxu0 0.0
        %816 = vmatprep.subr.mxu0 0.0
        %817 = vmatpush1.msra.mxu0 0.0
        %818 = vmatprep.subr.mxu0 0.0
        %819 = vmatpush1.msra.mxu0 0.0
        %820 = vmatprep.subr.mxu0 0.0
        %821 = vmatpush1.msra.mxu0 0.0
        %822 = vmatprep.subr.mxu0 0.0
        %823 = vmatpush1.msra.mxu0 0.0
        %824 = vmatprep.subr.mxu0 0.0
        %825 = vmatpush1.msra.mxu0 0.0
        %826 = vmatprep.subr.mxu0 0.0
        %827 = vmatpush1.msra.mxu0 0.0
        %828 = vmatprep.subr.mxu0 0.0
        %829 = vmatpush1.msra.mxu0 0.0
        %830 = vmatprep.subr.mxu0 0.0
        %831 = vmatpush1.msra.mxu0 0.0
        %832 = vmatprep.subr.mxu0 0.0
        %833 = vmatpush1.msra.mxu0 0.0
        %834 = vmatprep.subr.mxu0 0.0
        %835 = vmatpush1.msra.mxu0 0.0
        %836 = vmatprep.subr.mxu0 0.0
        %837 = vmatpush1.msra.mxu0 0.0
        %838 = vmatprep.subr.mxu0 0.0
        %839 = vmatpush1.msra.mxu0 0.0
        %840 = vmatprep.subr.mxu0 0.0
        %841 = vmatpush1.msra.mxu0 0.0
        %842 = vmatprep.subr.mxu0 %v810
        %843 = vmatpush1.msra.mxu0 %v808
        %844 = vmatprep.subr.mxu0 0.0
        %845 = vmatpush2.msra.mxu0 0.0
        %846 = vmatprep.subr.mxu0 0.0
        %847 = vmatpush2.msra.mxu0 0.0
        %848 = vmatprep.subr.mxu0 0.0
        %849 = vmatpush2.msra.mxu0 0.0
        %850 = vmatprep.subr.mxu0 0.0
        %851 = vmatpush2.msra.mxu0 0.0
        %852 = vmatprep.subr.mxu0 0.0
        %853 = vmatpush2.msra.mxu0 0.0
        %854 = vmatprep.subr.mxu0 0.0
        %855 = vmatpush2.msra.mxu0 0.0
        %856 = vmatprep.subr.mxu0 0.0
        %857 = vmatpush2.msra.mxu0 0.0
        %858 = vmatprep.subr.mxu0 0.0
        %859 = vmatpush2.msra.mxu0 0.0
        %860 = vmatprep.subr.mxu0 0.0
        %861 = vmatpush2.msra.mxu0 0.0
        %862 = vmatprep.subr.mxu0 0.0
        %863 = vmatpush2.msra.mxu0 0.0
        %864 = vmatprep.subr.mxu0 0.0
        %865 = vmatpush2.msra.mxu0 0.0
        %866 = vmatprep.subr.mxu0 0.0
        %867 = vmatpush2.msra.mxu0 0.0
        %868 = vmatprep.subr.mxu0 0.0
        %869 = vmatpush2.msra.mxu0 0.0
        %870 = vmatprep.subr.mxu0 0.0
        %871 = vmatpush2.msra.mxu0 0.0
        %872 = vmatprep.subr.mxu0 0.0
        %873 = vmatpush2.msra.mxu0 0.0
        %874 = vmatprep.subr.mxu0 0.0
        %875 = vmatpush2.msra.mxu0 0.0
        %876 = vmatprep.mubr.f32.mxu0 0.0
        %877 = vmatmul.mubr.f32.gmra.mxu0 %v805
        %v878 = vpop.f32.mrf.mxu0
        %v879 = vadd.f32 0.0, %v878
        %v880 = vpop.f32.mrf.mxu0
        %v881 = vadd.f32 0.0, %v880
        %882 = vdwg.mxu0
        %v883 = vmul.f32 %v691, %v879
        %v884 = vmul.f32 %v692, %v881
        %s885 = sld [smem:[#allocation2]]
        %v886 = vstv %s885
        %v887 = vmul.f32 %v447, %v886
        %v888 = vmul.f32 %v449, %v886
        %s889 = sld [smem:[#allocation2 + $0x80]]
        %v890 = vstv %s889
        %v891 = vmul.f32 %v523, %v890
        %v892 = vmul.f32 %v525, %v890
        %v893 = vadd.f32 %v887, %v891
        %v894 = vadd.f32 %v888, %v892
        %s895 = sld [smem:[#allocation2 + $0x100]]
        %v896 = vstv %s895
        %v897 = vmul.f32 %v599, %v896
        %v898 = vmul.f32 %v601, %v896
        %v899 = vadd.f32 %v893, %v897
        %v900 = vadd.f32 %v894, %v898
        %s901 = sld [smem:[#allocation2 + $0x180]]
        %v902 = vstv %s901
        %v903 = vmul.f32 %v675, %v902
        %v904 = vmul.f32 %v677, %v902
        %v905 = vadd.f32 %v899, %v903
        %v906 = vadd.f32 %v900, %v904
        %v907 = vld [vmem:[%s7] ss:$4 sm:$0x3]
        %v909 = vlaneseq
        %v910 = vshrl.u32 %v909, 7
        %v911 = vsub.s32 0, %v910
        %v912 = vrot.slane %v907, %v911
        %v913 = vlaneseq
        %v914 = vshrl.u32 %v913, 7
        %v915 = vsub.s32 1, %v914
        %v916 = vrot.slane %v907, %v915
        %v919 = vadd.f32 %v905, %v912
        %v920 = vadd.f32 %v906, %v916
        %v921 = vmul.f32 %v919, %v919
        %v922 = vmul.f32 %v920, %v920
        %v923 = vld [vmem:[%s3] sm:$0xff]
        %v924 = vld [vmem:[%s3 + $0x8] sm:$0xff]
        %v925 = vld [vmem:[%s3 + $0x10] sm:$0xff]
        %v926 = vld [vmem:[%s3 + $0x18] sm:$0xff]
        %v927 = vld [vmem:[%s3 + $0x20] sm:$0xff]
        %v928 = vld [vmem:[%s3 + $0x28] sm:$0xff]
        %v929 = vld [vmem:[%s3 + $0x30] sm:$0xff]
        %v930 = vld [vmem:[%s3 + $0x38] sm:$0xff]
        %v931 = vld [vmem:[%s3 + $0x40] sm:$0xff]
        %v932 = vld [vmem:[%s3 + $0x48] sm:$0xff]
        %v933 = vld [vmem:[%s3 + $0x50] sm:$0xff]
        %v934 = vld [vmem:[%s3 + $0x58] sm:$0xff]
        %v935 = vld [vmem:[%s3 + $0x60] sm:$0xff]
        %v936 = vld [vmem:[%s3 + $0x68] sm:$0xff]
        %v937 = vld [vmem:[%s3 + $0x70] sm:$0xff]
        %v938 = vld [vmem:[%s3 + $0x78] sm:$0xff]
        %v939 = vld [vmem:[%s3 + $0x80] sm:$0xff]
        %v940 = vld [vmem:[%s3 + $0x88] sm:$0xff]
        %v941 = vld [vmem:[%s3 + $0x90] sm:$0xff]
        %v942 = vld [vmem:[%s3 + $0x98] sm:$0xff]
        %v943 = vld [vmem:[%s3 + $0xa0] sm:$0xff]
        %v944 = vld [vmem:[%s3 + $0xa8] sm:$0xff]
        %v945 = vld [vmem:[%s3 + $0xb0] sm:$0xff]
        %v946 = vld [vmem:[%s3 + $0xb8] sm:$0xff]
        %v947 = vld [vmem:[%s3 + $0xc0] sm:$0xff]
        %v948 = vld [vmem:[%s3 + $0xc8] sm:$0xff]
        %v949 = vld [vmem:[%s3 + $0xd0] sm:$0xff]
        %v950 = vld [vmem:[%s3 + $0xd8] sm:$0xff]
        %v951 = vld [vmem:[%s3 + $0xe0] sm:$0xff]
        %v952 = vld [vmem:[%s3 + $0xe8] sm:$0xff]
        %v953 = vld [vmem:[%s3 + $0xf0] sm:$0xff]
        %v954 = vld [vmem:[%s3 + $0xf8] sm:$0xff]
        %955 = vmatprep.subr.mxu0 0.0
        %956 = vmatpush1.msra.mxu0 %v938
        %957 = vmatprep.subr.mxu0 0.0
        %958 = vmatpush1.msra.mxu0 %v937
        %959 = vmatprep.subr.mxu0 0.0
        %960 = vmatpush1.msra.mxu0 %v936
        %961 = vmatprep.subr.mxu0 0.0
        %962 = vmatpush1.msra.mxu0 %v935
        %963 = vmatprep.subr.mxu0 0.0
        %964 = vmatpush1.msra.mxu0 %v934
        %965 = vmatprep.subr.mxu0 0.0
        %966 = vmatpush1.msra.mxu0 %v933
        %967 = vmatprep.subr.mxu0 0.0
        %968 = vmatpush1.msra.mxu0 %v932
        %969 = vmatprep.subr.mxu0 0.0
        %970 = vmatpush1.msra.mxu0 %v931
        %971 = vmatprep.subr.mxu0 0.0
        %972 = vmatpush1.msra.mxu0 %v930
        %973 = vmatprep.subr.mxu0 0.0
        %974 = vmatpush1.msra.mxu0 %v929
        %975 = vmatprep.subr.mxu0 0.0
        %976 = vmatpush1.msra.mxu0 %v928
        %977 = vmatprep.subr.mxu0 0.0
        %978 = vmatpush1.msra.mxu0 %v927
        %979 = vmatprep.subr.mxu0 0.0
        %980 = vmatpush1.msra.mxu0 %v926
        %981 = vmatprep.subr.mxu0 0.0
        %982 = vmatpush1.msra.mxu0 %v925
        %983 = vmatprep.subr.mxu0 0.0
        %984 = vmatpush1.msra.mxu0 %v924
        %985 = vmatprep.subr.mxu0 0.0
        %986 = vmatpush1.msra.mxu0 %v923
        %987 = vmatprep.subr.mxu0 0.0
        %988 = vmatpush2.msra.mxu0 %v954
        %989 = vmatprep.subr.mxu0 0.0
        %990 = vmatpush2.msra.mxu0 %v953
        %991 = vmatprep.subr.mxu0 0.0
        %992 = vmatpush2.msra.mxu0 %v952
        %993 = vmatprep.subr.mxu0 0.0
        %994 = vmatpush2.msra.mxu0 %v951
        %995 = vmatprep.subr.mxu0 0.0
        %996 = vmatpush2.msra.mxu0 %v950
        %997 = vmatprep.subr.mxu0 0.0
        %998 = vmatpush2.msra.mxu0 %v949
        %999 = vmatprep.subr.mxu0 0.0
        %1000 = vmatpush2.msra.mxu0 %v948
        %1001 = vmatprep.subr.mxu0 0.0
        %1002 = vmatpush2.msra.mxu0 %v947
        %1003 = vmatprep.subr.mxu0 0.0
        %1004 = vmatpush2.msra.mxu0 %v946
        %1005 = vmatprep.subr.mxu0 0.0
        %1006 = vmatpush2.msra.mxu0 %v945
        %1007 = vmatprep.subr.mxu0 0.0
        %1008 = vmatpush2.msra.mxu0 %v944
        %1009 = vmatprep.subr.mxu0 0.0
        %1010 = vmatpush2.msra.mxu0 %v943
        %1011 = vmatprep.subr.mxu0 0.0
        %1012 = vmatpush2.msra.mxu0 %v942
        %1013 = vmatprep.subr.mxu0 0.0
        %1014 = vmatpush2.msra.mxu0 %v941
        %1015 = vmatprep.subr.mxu0 0.0
        %1016 = vmatpush2.msra.mxu0 %v940
        %1017 = vmatprep.subr.mxu0 0.0
        %1018 = vmatpush2.msra.mxu0 %v939
        %1019 = vmatprep.mubr.f32.mxu0 %v922
        %1020 = vmatmul.mubr.f32.gmra.mxu0 %v921
        %v1021 = vpop.f32.mrf.mxu0
        %v1022 = vadd.f32 0.0, %v1021
        %v1023 = vpop.f32.mrf.mxu0
        %1024 = vdwg.mxu0
        %v1025 = vmul.f32 %v1022, 0.03125
        %v1026 = vadd.f32 %v1025, 1e-05
        %v1027 = vrsqrt.pop %v1026
        %v1028 = vld [vmem:[%s5] sm:$0xff]
        %v1030 = vcombine.high %v1028, %v1028
        %v1032 = vsel %vm803, %v1027, 0
        %v1034 = vsel %vm807, %v1028, 0
        %v1036 = vsel %vm807, %v1030, 0
        %1038 = vmatprep.subr.mxu0 0.0
        %1039 = vmatpush1.msra.mxu0 0.0
        %1040 = vmatprep.subr.mxu0 0.0
        %1041 = vmatpush1.msra.mxu0 0.0
        %1042 = vmatprep.subr.mxu0 0.0
        %1043 = vmatpush1.msra.mxu0 0.0
        %1044 = vmatprep.subr.mxu0 0.0
        %1045 = vmatpush1.msra.mxu0 0.0
        %1046 = vmatprep.subr.mxu0 0.0
        %1047 = vmatpush1.msra.mxu0 0.0
        %1048 = vmatprep.subr.mxu0 0.0
        %1049 = vmatpush1.msra.mxu0 0.0
        %1050 = vmatprep.subr.mxu0 0.0
        %1051 = vmatpush1.msra.mxu0 0.0
        %1052 = vmatprep.subr.mxu0 0.0
        %1053 = vmatpush1.msra.mxu0 0.0
        %1054 = vmatprep.subr.mxu0 0.0
        %1055 = vmatpush1.msra.mxu0 0.0
        %1056 = vmatprep.subr.mxu0 0.0
        %1057 = vmatpush1.msra.mxu0 0.0
        %1058 = vmatprep.subr.mxu0 0.0
        %1059 = vmatpush1.msra.mxu0 0.0
        %1060 = vmatprep.subr.mxu0 0.0
        %1061 = vmatpush1.msra.mxu0 0.0
        %1062 = vmatprep.subr.mxu0 0.0
        %1063 = vmatpush1.msra.mxu0 0.0
        %1064 = vmatprep.subr.mxu0 0.0
        %1065 = vmatpush1.msra.mxu0 0.0
        %1066 = vmatprep.subr.mxu0 0.0
        %1067 = vmatpush1.msra.mxu0 0.0
        %1068 = vmatprep.subr.mxu0 %v1036
        %1069 = vmatpush1.msra.mxu0 %v1034
        %1070 = vmatprep.subr.mxu0 0.0
        %1071 = vmatpush2.msra.mxu0 0.0
        %1072 = vmatprep.subr.mxu0 0.0
        %1073 = vmatpush2.msra.mxu0 0.0
        %1074 = vmatprep.subr.mxu0 0.0
        %1075 = vmatpush2.msra.mxu0 0.0
        %1076 = vmatprep.subr.mxu0 0.0
        %1077 = vmatpush2.msra.mxu0 0.0
        %1078 = vmatprep.subr.mxu0 0.0
        %1079 = vmatpush2.msra.mxu0 0.0
        %1080 = vmatprep.subr.mxu0 0.0
        %1081 = vmatpush2.msra.mxu0 0.0
        %1082 = vmatprep.subr.mxu0 0.0
        %1083 = vmatpush2.msra.mxu0 0.0
        %1084 = vmatprep.subr.mxu0 0.0
        %1085 = vmatpush2.msra.mxu0 0.0
        %1086 = vmatprep.subr.mxu0 0.0
        %1087 = vmatpush2.msra.mxu0 0.0
        %1088 = vmatprep.subr.mxu0 0.0
        %1089 = vmatpush2.msra.mxu0 0.0
        %1090 = vmatprep.subr.mxu0 0.0
        %1091 = vmatpush2.msra.mxu0 0.0
        %1092 = vmatprep.subr.mxu0 0.0
        %1093 = vmatpush2.msra.mxu0 0.0
        %1094 = vmatprep.subr.mxu0 0.0
        %1095 = vmatpush2.msra.mxu0 0.0
        %1096 = vmatprep.subr.mxu0 0.0
        %1097 = vmatpush2.msra.mxu0 0.0
        %1098 = vmatprep.subr.mxu0 0.0
        %1099 = vmatpush2.msra.mxu0 0.0
        %1100 = vmatprep.subr.mxu0 0.0
        %1101 = vmatpush2.msra.mxu0 0.0
        %1102 = vmatprep.mubr.f32.mxu0 0.0
        %1103 = vmatmul.mubr.f32.gmra.mxu0 %v1032
        %v1104 = vpop.f32.mrf.mxu0
        %v1105 = vadd.f32 0.0, %v1104
        %v1106 = vpop.f32.mrf.mxu0
        %v1107 = vadd.f32 0.0, %v1106
        %1108 = vdwg.mxu0
        %v1109 = vmul.f32 %v919, %v1105
        %v1110 = vmul.f32 %v920, %v1107
        %v1111 = vadd.f32 %v883, %v1109
        %v1112 = vadd.f32 %v884, %v1110
        %v1115 = vcombine.low %v1111, %v1112
        %v1117 = vunpack.c.l.s4 1966171168
        %v1118 = vunpack.c.0.s8 %v1117
        %v1119 = vlaneseq
        %v1120 = vshrl.u32 %v1119, 7
        %v1121 = vsub.s32 %v1118, %v1120
        %v1122 = vrot.slane %v1115, %v1121
        %v1124 = vunpack.c.l.s4 1966171168
        %v1125 = vunpack.c.0.s8 %v1124
        %v1126 = vlaneseq
        %v1127 = vshrl.u32 %v1126, 7
        %v1128 = vsub.s32 %v1125, %v1127
        %v1129 = vrot.slane %v1122, %v1128
        %v1131 = vlaneseq
        %vm1132 = vcmp.ge.s32.totalorder %v1131, 0
        %vm1133 = vcmp.lt.s32.totalorder %v1131, 256
        %vm1134 = vmand %vm1132, %vm1133
        %1135 = vst.msk [vmem:[%s359] sm:$0x3] %vm1134, %v1129
        %v1136 = vadd.f32 %v523, %v684
        %v1137 = vadd.f32 %v525, %v688
        %v1138 = vmul.f32 %v1136, %v1136
        %v1139 = vmul.f32 %v1137, %v1137
        %v1140 = vld [vmem:[%s4] sm:$0xff]
        %v1141 = vld [vmem:[%s4 + $0x8] sm:$0xff]
        %v1142 = vld [vmem:[%s4 + $0x10] sm:$0xff]
        %v1143 = vld [vmem:[%s4 + $0x18] sm:$0xff]
        %v1144 = vld [vmem:[%s4 + $0x20] sm:$0xff]
        %v1145 = vld [vmem:[%s4 + $0x28] sm:$0xff]
        %v1146 = vld [vmem:[%s4 + $0x30] sm:$0xff]
        %v1147 = vld [vmem:[%s4 + $0x38] sm:$0xff]
        %v1148 = vld [vmem:[%s4 + $0x40] sm:$0xff]
        %v1149 = vld [vmem:[%s4 + $0x48] sm:$0xff]
        %v1150 = vld [vmem:[%s4 + $0x50] sm:$0xff]
        %v1151 = vld [vmem:[%s4 + $0x58] sm:$0xff]
        %v1152 = vld [vmem:[%s4 + $0x60] sm:$0xff]
        %v1153 = vld [vmem:[%s4 + $0x68] sm:$0xff]
        %v1154 = vld [vmem:[%s4 + $0x70] sm:$0xff]
        %v1155 = vld [vmem:[%s4 + $0x78] sm:$0xff]
        %v1156 = vld [vmem:[%s4 + $0x80] sm:$0xff]
        %v1157 = vld [vmem:[%s4 + $0x88] sm:$0xff]
        %v1158 = vld [vmem:[%s4 + $0x90] sm:$0xff]
        %v1159 = vld [vmem:[%s4 + $0x98] sm:$0xff]
        %v1160 = vld [vmem:[%s4 + $0xa0] sm:$0xff]
        %v1161 = vld [vmem:[%s4 + $0xa8] sm:$0xff]
        %v1162 = vld [vmem:[%s4 + $0xb0] sm:$0xff]
        %v1163 = vld [vmem:[%s4 + $0xb8] sm:$0xff]
        %v1164 = vld [vmem:[%s4 + $0xc0] sm:$0xff]
        %v1165 = vld [vmem:[%s4 + $0xc8] sm:$0xff]
        %v1166 = vld [vmem:[%s4 + $0xd0] sm:$0xff]
        %v1167 = vld [vmem:[%s4 + $0xd8] sm:$0xff]
        %v1168 = vld [vmem:[%s4 + $0xe0] sm:$0xff]
        %v1169 = vld [vmem:[%s4 + $0xe8] sm:$0xff]
        %v1170 = vld [vmem:[%s4 + $0xf0] sm:$0xff]
        %v1171 = vld [vmem:[%s4 + $0xf8] sm:$0xff]
        %1172 = vmatprep.subr.mxu0 0.0
        %1173 = vmatpush1.msra.mxu0 %v1155
        %1174 = vmatprep.subr.mxu0 0.0
        %1175 = vmatpush1.msra.mxu0 %v1154
        %1176 = vmatprep.subr.mxu0 0.0
        %1177 = vmatpush1.msra.mxu0 %v1153
        %1178 = vmatprep.subr.mxu0 0.0
        %1179 = vmatpush1.msra.mxu0 %v1152
        %1180 = vmatprep.subr.mxu0 0.0
        %1181 = vmatpush1.msra.mxu0 %v1151
        %1182 = vmatprep.subr.mxu0 0.0
        %1183 = vmatpush1.msra.mxu0 %v1150
        %1184 = vmatprep.subr.mxu0 0.0
        %1185 = vmatpush1.msra.mxu0 %v1149
        %1186 = vmatprep.subr.mxu0 0.0
        %1187 = vmatpush1.msra.mxu0 %v1148
        %1188 = vmatprep.subr.mxu0 0.0
        %1189 = vmatpush1.msra.mxu0 %v1147
        %1190 = vmatprep.subr.mxu0 0.0
        %1191 = vmatpush1.msra.mxu0 %v1146
        %1192 = vmatprep.subr.mxu0 0.0
        %1193 = vmatpush1.msra.mxu0 %v1145
        %1194 = vmatprep.subr.mxu0 0.0
        %1195 = vmatpush1.msra.mxu0 %v1144
        %1196 = vmatprep.subr.mxu0 0.0
        %1197 = vmatpush1.msra.mxu0 %v1143
        %1198 = vmatprep.subr.mxu0 0.0
        %1199 = vmatpush1.msra.mxu0 %v1142
        %1200 = vmatprep.subr.mxu0 0.0
        %1201 = vmatpush1.msra.mxu0 %v1141
        %1202 = vmatprep.subr.mxu0 0.0
        %1203 = vmatpush1.msra.mxu0 %v1140
        %1204 = vmatprep.subr.mxu0 0.0
        %1205 = vmatpush2.msra.mxu0 %v1171
        %1206 = vmatprep.subr.mxu0 0.0
        %1207 = vmatpush2.msra.mxu0 %v1170
        %1208 = vmatprep.subr.mxu0 0.0
        %1209 = vmatpush2.msra.mxu0 %v1169
        %1210 = vmatprep.subr.mxu0 0.0
        %1211 = vmatpush2.msra.mxu0 %v1168
        %1212 = vmatprep.subr.mxu0 0.0
        %1213 = vmatpush2.msra.mxu0 %v1167
        %1214 = vmatprep.subr.mxu0 0.0
        %1215 = vmatpush2.msra.mxu0 %v1166
        %1216 = vmatprep.subr.mxu0 0.0
        %1217 = vmatpush2.msra.mxu0 %v1165
        %1218 = vmatprep.subr.mxu0 0.0
        %1219 = vmatpush2.msra.mxu0 %v1164
        %1220 = vmatprep.subr.mxu0 0.0
        %1221 = vmatpush2.msra.mxu0 %v1163
        %1222 = vmatprep.subr.mxu0 0.0
        %1223 = vmatpush2.msra.mxu0 %v1162
        %1224 = vmatprep.subr.mxu0 0.0
        %1225 = vmatpush2.msra.mxu0 %v1161
        %1226 = vmatprep.subr.mxu0 0.0
        %1227 = vmatpush2.msra.mxu0 %v1160
        %1228 = vmatprep.subr.mxu0 0.0
        %1229 = vmatpush2.msra.mxu0 %v1159
        %1230 = vmatprep.subr.mxu0 0.0
        %1231 = vmatpush2.msra.mxu0 %v1158
        %1232 = vmatprep.subr.mxu0 0.0
        %1233 = vmatpush2.msra.mxu0 %v1157
        %1234 = vmatprep.subr.mxu0 0.0
        %1235 = vmatpush2.msra.mxu0 %v1156
        %1236 = vmatprep.mubr.f32.mxu0 %v1139
        %1237 = vmatmul.mubr.f32.gmra.mxu0 %v1138
        %v1238 = vpop.f32.mrf.mxu0
        %v1239 = vadd.f32 0.0, %v1238
        %v1240 = vpop.f32.mrf.mxu0
        %1241 = vdwg.mxu0
        %v1242 = vmul.f32 %v1239, 0.03125
        %v1243 = vadd.f32 %v1242, 1e-05
        %v1244 = vrsqrt.pop %v1243
        %v1245 = vld [vmem:[%s6] sm:$0xff]
        %v1247 = vcombine.high %v1245, %v1245
        %v1249 = vsel %vm803, %v1244, 0
        %v1251 = vsel %vm807, %v1245, 0
        %v1253 = vsel %vm807, %v1247, 0
        %1255 = vmatprep.subr.mxu0 0.0
        %1256 = vmatpush1.msra.mxu0 0.0
        %1257 = vmatprep.subr.mxu0 0.0
        %1258 = vmatpush1.msra.mxu0 0.0
        %1259 = vmatprep.subr.mxu0 0.0
        %1260 = vmatpush1.msra.mxu0 0.0
        %1261 = vmatprep.subr.mxu0 0.0
        %1262 = vmatpush1.msra.mxu0 0.0
        %1263 = vmatprep.subr.mxu0 0.0
        %1264 = vmatpush1.msra.mxu0 0.0
        %1265 = vmatprep.subr.mxu0 0.0
        %1266 = vmatpush1.msra.mxu0 0.0
        %1267 = vmatprep.subr.mxu0 0.0
        %1268 = vmatpush1.msra.mxu0 0.0
        %1269 = vmatprep.subr.mxu0 0.0
        %1270 = vmatpush1.msra.mxu0 0.0
        %1271 = vmatprep.subr.mxu0 0.0
        %1272 = vmatpush1.msra.mxu0 0.0
        %1273 = vmatprep.subr.mxu0 0.0
        %1274 = vmatpush1.msra.mxu0 0.0
        %1275 = vmatprep.subr.mxu0 0.0
        %1276 = vmatpush1.msra.mxu0 0.0
        %1277 = vmatprep.subr.mxu0 0.0
        %1278 = vmatpush1.msra.mxu0 0.0
        %1279 = vmatprep.subr.mxu0 0.0
        %1280 = vmatpush1.msra.mxu0 0.0
        %1281 = vmatprep.subr.mxu0 0.0
        %1282 = vmatpush1.msra.mxu0 0.0
        %1283 = vmatprep.subr.mxu0 0.0
        %1284 = vmatpush1.msra.mxu0 0.0
        %1285 = vmatprep.subr.mxu0 %v1253
        %1286 = vmatpush1.msra.mxu0 %v1251
        %1287 = vmatprep.subr.mxu0 0.0
        %1288 = vmatpush2.msra.mxu0 0.0
        %1289 = vmatprep.subr.mxu0 0.0
        %1290 = vmatpush2.msra.mxu0 0.0
        %1291 = vmatprep.subr.mxu0 0.0
        %1292 = vmatpush2.msra.mxu0 0.0
        %1293 = vmatprep.subr.mxu0 0.0
        %1294 = vmatpush2.msra.mxu0 0.0
        %1295 = vmatprep.subr.mxu0 0.0
        %1296 = vmatpush2.msra.mxu0 0.0
        %1297 = vmatprep.subr.mxu0 0.0
        %1298 = vmatpush2.msra.mxu0 0.0
        %1299 = vmatprep.subr.mxu0 0.0
        %1300 = vmatpush2.msra.mxu0 0.0
        %1301 = vmatprep.subr.mxu0 0.0
        %1302 = vmatpush2.msra.mxu0 0.0
        %1303 = vmatprep.subr.mxu0 0.0
        %1304 = vmatpush2.msra.mxu0 0.0
        %1305 = vmatprep.subr.mxu0 0.0
        %1306 = vmatpush2.msra.mxu0 0.0
        %1307 = vmatprep.subr.mxu0 0.0
        %1308 = vmatpush2.msra.mxu0 0.0
        %1309 = vmatprep.subr.mxu0 0.0
        %1310 = vmatpush2.msra.mxu0 0.0
        %1311 = vmatprep.subr.mxu0 0.0
        %1312 = vmatpush2.msra.mxu0 0.0
        %1313 = vmatprep.subr.mxu0 0.0
        %1314 = vmatpush2.msra.mxu0 0.0
        %1315 = vmatprep.subr.mxu0 0.0
        %1316 = vmatpush2.msra.mxu0 0.0
        %1317 = vmatprep.subr.mxu0 0.0
        %1318 = vmatpush2.msra.mxu0 0.0
        %1319 = vmatprep.mubr.f32.mxu0 0.0
        %1320 = vmatmul.mubr.f32.gmra.mxu0 %v1249
        %v1321 = vpop.f32.mrf.mxu0
        %v1322 = vadd.f32 0.0, %v1321
        %v1323 = vpop.f32.mrf.mxu0
        %v1324 = vadd.f32 0.0, %v1323
        %1325 = vdwg.mxu0
        %v1326 = vmul.f32 %v1136, %v1322
        %v1327 = vmul.f32 %v1137, %v1324
        %s1328 = sld [smem:[#allocation2 + $0x1]]
        %v1329 = vstv %s1328
        %v1330 = vmul.f32 %v447, %v1329
        %v1331 = vmul.f32 %v449, %v1329
        %s1332 = sld [smem:[#allocation2 + $0x81]]
        %v1333 = vstv %s1332
        %v1334 = vmul.f32 %v523, %v1333
        %v1335 = vmul.f32 %v525, %v1333
        %v1336 = vadd.f32 %v1330, %v1334
        %v1337 = vadd.f32 %v1331, %v1335
        %s1338 = sld [smem:[#allocation2 + $0x101]]
        %v1339 = vstv %s1338
        %v1340 = vmul.f32 %v599, %v1339
        %v1341 = vmul.f32 %v601, %v1339
        %v1342 = vadd.f32 %v1336, %v1340
        %v1343 = vadd.f32 %v1337, %v1341
        %s1344 = sld [smem:[#allocation2 + $0x181]]
        %v1345 = vstv %s1344
        %v1346 = vmul.f32 %v675, %v1345
        %v1347 = vmul.f32 %v677, %v1345
        %v1348 = vadd.f32 %v1342, %v1346
        %v1349 = vadd.f32 %v1343, %v1347
        %s1350 = scalar_lea.vmem %s7, 1
        %v1351 = vld [vmem:[%s1350] ss:$4 sm:$0x3]
        %v1353 = vlaneseq
        %v1354 = vshrl.u32 %v1353, 7
        %v1355 = vsub.s32 0, %v1354
        %v1356 = vrot.slane %v1351, %v1355
        %v1357 = vlaneseq
        %v1358 = vshrl.u32 %v1357, 7
        %v1359 = vsub.s32 1, %v1358
        %v1360 = vrot.slane %v1351, %v1359
        %v1363 = vadd.f32 %v1348, %v1356
        %v1364 = vadd.f32 %v1349, %v1360
        %v1365 = vmul.f32 %v1363, %v1363
        %v1366 = vmul.f32 %v1364, %v1364
        %v1367 = vld [vmem:[%s3] sm:$0xff]
        %v1368 = vld [vmem:[%s3 + $0x8] sm:$0xff]
        %v1369 = vld [vmem:[%s3 + $0x10] sm:$0xff]
        %v1370 = vld [vmem:[%s3 + $0x18] sm:$0xff]
        %v1371 = vld [vmem:[%s3 + $0x20] sm:$0xff]
        %v1372 = vld [vmem:[%s3 + $0x28] sm:$0xff]
        %v1373 = vld [vmem:[%s3 + $0x30] sm:$0xff]
        %v1374 = vld [vmem:[%s3 + $0x38] sm:$0xff]
        %v1375 = vld [vmem:[%s3 + $0x40] sm:$0xff]
        %v1376 = vld [vmem:[%s3 + $0x48] sm:$0xff]
        %v1377 = vld [vmem:[%s3 + $0x50] sm:$0xff]
        %v1378 = vld [vmem:[%s3 + $0x58] sm:$0xff]
        %v1379 = vld [vmem:[%s3 + $0x60] sm:$0xff]
        %v1380 = vld [vmem:[%s3 + $0x68] sm:$0xff]
        %v1381 = vld [vmem:[%s3 + $0x70] sm:$0xff]
        %v1382 = vld [vmem:[%s3 + $0x78] sm:$0xff]
        %v1383 = vld [vmem:[%s3 + $0x80] sm:$0xff]
        %v1384 = vld [vmem:[%s3 + $0x88] sm:$0xff]
        %v1385 = vld [vmem:[%s3 + $0x90] sm:$0xff]
        %v1386 = vld [vmem:[%s3 + $0x98] sm:$0xff]
        %v1387 = vld [vmem:[%s3 + $0xa0] sm:$0xff]
        %v1388 = vld [vmem:[%s3 + $0xa8] sm:$0xff]
        %v1389 = vld [vmem:[%s3 + $0xb0] sm:$0xff]
        %v1390 = vld [vmem:[%s3 + $0xb8] sm:$0xff]
        %v1391 = vld [vmem:[%s3 + $0xc0] sm:$0xff]
        %v1392 = vld [vmem:[%s3 + $0xc8] sm:$0xff]
        %v1393 = vld [vmem:[%s3 + $0xd0] sm:$0xff]
        %v1394 = vld [vmem:[%s3 + $0xd8] sm:$0xff]
        %v1395 = vld [vmem:[%s3 + $0xe0] sm:$0xff]
        %v1396 = vld [vmem:[%s3 + $0xe8] sm:$0xff]
        %v1397 = vld [vmem:[%s3 + $0xf0] sm:$0xff]
        %v1398 = vld [vmem:[%s3 + $0xf8] sm:$0xff]
        %1399 = vmatprep.subr.mxu0 0.0
        %1400 = vmatpush1.msra.mxu0 %v1382
        %1401 = vmatprep.subr.mxu0 0.0
        %1402 = vmatpush1.msra.mxu0 %v1381
        %1403 = vmatprep.subr.mxu0 0.0
        %1404 = vmatpush1.msra.mxu0 %v1380
        %1405 = vmatprep.subr.mxu0 0.0
        %1406 = vmatpush1.msra.mxu0 %v1379
        %1407 = vmatprep.subr.mxu0 0.0
        %1408 = vmatpush1.msra.mxu0 %v1378
        %1409 = vmatprep.subr.mxu0 0.0
        %1410 = vmatpush1.msra.mxu0 %v1377
        %1411 = vmatprep.subr.mxu0 0.0
        %1412 = vmatpush1.msra.mxu0 %v1376
        %1413 = vmatprep.subr.mxu0 0.0
        %1414 = vmatpush1.msra.mxu0 %v1375
        %1415 = vmatprep.subr.mxu0 0.0
        %1416 = vmatpush1.msra.mxu0 %v1374
        %1417 = vmatprep.subr.mxu0 0.0
        %1418 = vmatpush1.msra.mxu0 %v1373
        %1419 = vmatprep.subr.mxu0 0.0
        %1420 = vmatpush1.msra.mxu0 %v1372
        %1421 = vmatprep.subr.mxu0 0.0
        %1422 = vmatpush1.msra.mxu0 %v1371
        %1423 = vmatprep.subr.mxu0 0.0
        %1424 = vmatpush1.msra.mxu0 %v1370
        %1425 = vmatprep.subr.mxu0 0.0
        %1426 = vmatpush1.msra.mxu0 %v1369
        %1427 = vmatprep.subr.mxu0 0.0
        %1428 = vmatpush1.msra.mxu0 %v1368
        %1429 = vmatprep.subr.mxu0 0.0
        %1430 = vmatpush1.msra.mxu0 %v1367
        %1431 = vmatprep.subr.mxu0 0.0
        %1432 = vmatpush2.msra.mxu0 %v1398
        %1433 = vmatprep.subr.mxu0 0.0
        %1434 = vmatpush2.msra.mxu0 %v1397
        %1435 = vmatprep.subr.mxu0 0.0
        %1436 = vmatpush2.msra.mxu0 %v1396
        %1437 = vmatprep.subr.mxu0 0.0
        %1438 = vmatpush2.msra.mxu0 %v1395
        %1439 = vmatprep.subr.mxu0 0.0
        %1440 = vmatpush2.msra.mxu0 %v1394
        %1441 = vmatprep.subr.mxu0 0.0
        %1442 = vmatpush2.msra.mxu0 %v1393
        %1443 = vmatprep.subr.mxu0 0.0
        %1444 = vmatpush2.msra.mxu0 %v1392
        %1445 = vmatprep.subr.mxu0 0.0
        %1446 = vmatpush2.msra.mxu0 %v1391
        %1447 = vmatprep.subr.mxu0 0.0
        %1448 = vmatpush2.msra.mxu0 %v1390
        %1449 = vmatprep.subr.mxu0 0.0
        %1450 = vmatpush2.msra.mxu0 %v1389
        %1451 = vmatprep.subr.mxu0 0.0
        %1452 = vmatpush2.msra.mxu0 %v1388
        %1453 = vmatprep.subr.mxu0 0.0
        %1454 = vmatpush2.msra.mxu0 %v1387
        %1455 = vmatprep.subr.mxu0 0.0
        %1456 = vmatpush2.msra.mxu0 %v1386
        %1457 = vmatprep.subr.mxu0 0.0
        %1458 = vmatpush2.msra.mxu0 %v1385
        %1459 = vmatprep.subr.mxu0 0.0
        %1460 = vmatpush2.msra.mxu0 %v1384
        %1461 = vmatprep.subr.mxu0 0.0
        %1462 = vmatpush2.msra.mxu0 %v1383
        %1463 = vmatprep.mubr.f32.mxu0 %v1366
        %1464 = vmatmul.mubr.f32.gmra.mxu0 %v1365
        %v1465 = vpop.f32.mrf.mxu0
        %v1466 = vadd.f32 0.0, %v1465
        %v1467 = vpop.f32.mrf.mxu0
        %1468 = vdwg.mxu0
        %v1469 = vmul.f32 %v1466, 0.03125
        %v1470 = vadd.f32 %v1469, 1e-05
        %v1471 = vrsqrt.pop %v1470
        %v1472 = vld [vmem:[%s5] sm:$0xff]
        %v1474 = vcombine.high %v1472, %v1472
        %v1476 = vsel %vm803, %v1471, 0
        %v1478 = vsel %vm807, %v1472, 0
        %v1480 = vsel %vm807, %v1474, 0
        %1482 = vmatprep.subr.mxu0 0.0
        %1483 = vmatpush1.msra.mxu0 0.0
        %1484 = vmatprep.subr.mxu0 0.0
        %1485 = vmatpush1.msra.mxu0 0.0
        %1486 = vmatprep.subr.mxu0 0.0
        %1487 = vmatpush1.msra.mxu0 0.0
        %1488 = vmatprep.subr.mxu0 0.0
        %1489 = vmatpush1.msra.mxu0 0.0
        %1490 = vmatprep.subr.mxu0 0.0
        %1491 = vmatpush1.msra.mxu0 0.0
        %1492 = vmatprep.subr.mxu0 0.0
        %1493 = vmatpush1.msra.mxu0 0.0
        %1494 = vmatprep.subr.mxu0 0.0
        %1495 = vmatpush1.msra.mxu0 0.0
        %1496 = vmatprep.subr.mxu0 0.0
        %1497 = vmatpush1.msra.mxu0 0.0
        %1498 = vmatprep.subr.mxu0 0.0
        %1499 = vmatpush1.msra.mxu0 0.0
        %1500 = vmatprep.subr.mxu0 0.0
        %1501 = vmatpush1.msra.mxu0 0.0
        %1502 = vmatprep.subr.mxu0 0.0
        %1503 = vmatpush1.msra.mxu0 0.0
        %1504 = vmatprep.subr.mxu0 0.0
        %1505 = vmatpush1.msra.mxu0 0.0
        %1506 = vmatprep.subr.mxu0 0.0
        %1507 = vmatpush1.msra.mxu0 0.0
        %1508 = vmatprep.subr.mxu0 0.0
        %1509 = vmatpush1.msra.mxu0 0.0
        %1510 = vmatprep.subr.mxu0 0.0
        %1511 = vmatpush1.msra.mxu0 0.0
        %1512 = vmatprep.subr.mxu0 %v1480
        %1513 = vmatpush1.msra.mxu0 %v1478
        %1514 = vmatprep.subr.mxu0 0.0
        %1515 = vmatpush2.msra.mxu0 0.0
        %1516 = vmatprep.subr.mxu0 0.0
        %1517 = vmatpush2.msra.mxu0 0.0
        %1518 = vmatprep.subr.mxu0 0.0
        %1519 = vmatpush2.msra.mxu0 0.0
        %1520 = vmatprep.subr.mxu0 0.0
        %1521 = vmatpush2.msra.mxu0 0.0
        %1522 = vmatprep.subr.mxu0 0.0
        %1523 = vmatpush2.msra.mxu0 0.0
        %1524 = vmatprep.subr.mxu0 0.0
        %1525 = vmatpush2.msra.mxu0 0.0
        %1526 = vmatprep.subr.mxu0 0.0
        %1527 = vmatpush2.msra.mxu0 0.0
        %1528 = vmatprep.subr.mxu0 0.0
        %1529 = vmatpush2.msra.mxu0 0.0
        %1530 = vmatprep.subr.mxu0 0.0
        %1531 = vmatpush2.msra.mxu0 0.0
        %1532 = vmatprep.subr.mxu0 0.0
        %1533 = vmatpush2.msra.mxu0 0.0
        %1534 = vmatprep.subr.mxu0 0.0
        %1535 = vmatpush2.msra.mxu0 0.0
        %1536 = vmatprep.subr.mxu0 0.0
        %1537 = vmatpush2.msra.mxu0 0.0
        %1538 = vmatprep.subr.mxu0 0.0
        %1539 = vmatpush2.msra.mxu0 0.0
        %1540 = vmatprep.subr.mxu0 0.0
        %1541 = vmatpush2.msra.mxu0 0.0
        %1542 = vmatprep.subr.mxu0 0.0
        %1543 = vmatpush2.msra.mxu0 0.0
        %1544 = vmatprep.subr.mxu0 0.0
        %1545 = vmatpush2.msra.mxu0 0.0
        %1546 = vmatprep.mubr.f32.mxu0 0.0
        %1547 = vmatmul.mubr.f32.gmra.mxu0 %v1476
        %v1548 = vpop.f32.mrf.mxu0
        %v1549 = vadd.f32 0.0, %v1548
        %v1550 = vpop.f32.mrf.mxu0
        %v1551 = vadd.f32 0.0, %v1550
        %1552 = vdwg.mxu0
        %v1553 = vmul.f32 %v1363, %v1549
        %v1554 = vmul.f32 %v1364, %v1551
        %v1555 = vadd.f32 %v1326, %v1553
        %v1556 = vadd.f32 %v1327, %v1554
        %v1559 = vcombine.low %v1555, %v1556
        %v1561 = vunpack.c.l.s4 1966171168
        %v1562 = vunpack.c.0.s8 %v1561
        %v1563 = vlaneseq
        %v1564 = vshrl.u32 %v1563, 7
        %v1565 = vsub.s32 %v1562, %v1564
        %v1566 = vrot.slane %v1559, %v1565
        %v1568 = vunpack.c.l.s4 1966171168
        %v1569 = vunpack.c.0.s8 %v1568
        %v1570 = vlaneseq
        %v1571 = vshrl.u32 %v1570, 7
        %v1572 = vsub.s32 %v1569, %v1571
        %v1573 = vrot.slane %v1566, %v1572
        %s1575 = scalar_lea.vmem %s359, 2 [#allocation5]
        %1576 = vst.msk [vmem:[%s1575] sm:$0x3] %vm1134, %v1573
        %v1577 = vadd.f32 %v599, %v684
        %v1578 = vadd.f32 %v601, %v688
        %v1579 = vmul.f32 %v1577, %v1577
        %v1580 = vmul.f32 %v1578, %v1578
        %v1581 = vld [vmem:[%s4] sm:$0xff]
        %v1582 = vld [vmem:[%s4 + $0x8] sm:$0xff]
        %v1583 = vld [vmem:[%s4 + $0x10] sm:$0xff]
        %v1584 = vld [vmem:[%s4 + $0x18] sm:$0xff]
        %v1585 = vld [vmem:[%s4 + $0x20] sm:$0xff]
        %v1586 = vld [vmem:[%s4 + $0x28] sm:$0xff]
        %v1587 = vld [vmem:[%s4 + $0x30] sm:$0xff]
        %v1588 = vld [vmem:[%s4 + $0x38] sm:$0xff]
        %v1589 = vld [vmem:[%s4 + $0x40] sm:$0xff]
        %v1590 = vld [vmem:[%s4 + $0x48] sm:$0xff]
        %v1591 = vld [vmem:[%s4 + $0x50] sm:$0xff]
        %v1592 = vld [vmem:[%s4 + $0x58] sm:$0xff]
        %v1593 = vld [vmem:[%s4 + $0x60] sm:$0xff]
        %v1594 = vld [vmem:[%s4 + $0x68] sm:$0xff]
        %v1595 = vld [vmem:[%s4 + $0x70] sm:$0xff]
        %v1596 = vld [vmem:[%s4 + $0x78] sm:$0xff]
        %v1597 = vld [vmem:[%s4 + $0x80] sm:$0xff]
        %v1598 = vld [vmem:[%s4 + $0x88] sm:$0xff]
        %v1599 = vld [vmem:[%s4 + $0x90] sm:$0xff]
        %v1600 = vld [vmem:[%s4 + $0x98] sm:$0xff]
        %v1601 = vld [vmem:[%s4 + $0xa0] sm:$0xff]
        %v1602 = vld [vmem:[%s4 + $0xa8] sm:$0xff]
        %v1603 = vld [vmem:[%s4 + $0xb0] sm:$0xff]
        %v1604 = vld [vmem:[%s4 + $0xb8] sm:$0xff]
        %v1605 = vld [vmem:[%s4 + $0xc0] sm:$0xff]
        %v1606 = vld [vmem:[%s4 + $0xc8] sm:$0xff]
        %v1607 = vld [vmem:[%s4 + $0xd0] sm:$0xff]
        %v1608 = vld [vmem:[%s4 + $0xd8] sm:$0xff]
        %v1609 = vld [vmem:[%s4 + $0xe0] sm:$0xff]
        %v1610 = vld [vmem:[%s4 + $0xe8] sm:$0xff]
        %v1611 = vld [vmem:[%s4 + $0xf0] sm:$0xff]
        %v1612 = vld [vmem:[%s4 + $0xf8] sm:$0xff]
        %1613 = vmatprep.subr.mxu0 0.0
        %1614 = vmatpush1.msra.mxu0 %v1596
        %1615 = vmatprep.subr.mxu0 0.0
        %1616 = vmatpush1.msra.mxu0 %v1595
        %1617 = vmatprep.subr.mxu0 0.0
        %1618 = vmatpush1.msra.mxu0 %v1594
        %1619 = vmatprep.subr.mxu0 0.0
        %1620 = vmatpush1.msra.mxu0 %v1593
        %1621 = vmatprep.subr.mxu0 0.0
        %1622 = vmatpush1.msra.mxu0 %v1592
        %1623 = vmatprep.subr.mxu0 0.0
        %1624 = vmatpush1.msra.mxu0 %v1591
        %1625 = vmatprep.subr.mxu0 0.0
        %1626 = vmatpush1.msra.mxu0 %v1590
        %1627 = vmatprep.subr.mxu0 0.0
        %1628 = vmatpush1.msra.mxu0 %v1589
        %1629 = vmatprep.subr.mxu0 0.0
        %1630 = vmatpush1.msra.mxu0 %v1588
        %1631 = vmatprep.subr.mxu0 0.0
        %1632 = vmatpush1.msra.mxu0 %v1587
        %1633 = vmatprep.subr.mxu0 0.0
        %1634 = vmatpush1.msra.mxu0 %v1586
        %1635 = vmatprep.subr.mxu0 0.0
        %1636 = vmatpush1.msra.mxu0 %v1585
        %1637 = vmatprep.subr.mxu0 0.0
        %1638 = vmatpush1.msra.mxu0 %v1584
        %1639 = vmatprep.subr.mxu0 0.0
        %1640 = vmatpush1.msra.mxu0 %v1583
        %1641 = vmatprep.subr.mxu0 0.0
        %1642 = vmatpush1.msra.mxu0 %v1582
        %1643 = vmatprep.subr.mxu0 0.0
        %1644 = vmatpush1.msra.mxu0 %v1581
        %1645 = vmatprep.subr.mxu0 0.0
        %1646 = vmatpush2.msra.mxu0 %v1612
        %1647 = vmatprep.subr.mxu0 0.0
        %1648 = vmatpush2.msra.mxu0 %v1611
        %1649 = vmatprep.subr.mxu0 0.0
        %1650 = vmatpush2.msra.mxu0 %v1610
        %1651 = vmatprep.subr.mxu0 0.0
        %1652 = vmatpush2.msra.mxu0 %v1609
        %1653 = vmatprep.subr.mxu0 0.0
        %1654 = vmatpush2.msra.mxu0 %v1608
        %1655 = vmatprep.subr.mxu0 0.0
        %1656 = vmatpush2.msra.mxu0 %v1607
        %1657 = vmatprep.subr.mxu0 0.0
        %1658 = vmatpush2.msra.mxu0 %v1606
        %1659 = vmatprep.subr.mxu0 0.0
        %1660 = vmatpush2.msra.mxu0 %v1605
        %1661 = vmatprep.subr.mxu0 0.0
        %1662 = vmatpush2.msra.mxu0 %v1604
        %1663 = vmatprep.subr.mxu0 0.0
        %1664 = vmatpush2.msra.mxu0 %v1603
        %1665 = vmatprep.subr.mxu0 0.0
        %1666 = vmatpush2.msra.mxu0 %v1602
        %1667 = vmatprep.subr.mxu0 0.0
        %1668 = vmatpush2.msra.mxu0 %v1601
        %1669 = vmatprep.subr.mxu0 0.0
        %1670 = vmatpush2.msra.mxu0 %v1600
        %1671 = vmatprep.subr.mxu0 0.0
        %1672 = vmatpush2.msra.mxu0 %v1599
        %1673 = vmatprep.subr.mxu0 0.0
        %1674 = vmatpush2.msra.mxu0 %v1598
        %1675 = vmatprep.subr.mxu0 0.0
        %1676 = vmatpush2.msra.mxu0 %v1597
        %1677 = vmatprep.mubr.f32.mxu0 %v1580
        %1678 = vmatmul.mubr.f32.gmra.mxu0 %v1579
        %v1679 = vpop.f32.mrf.mxu0
        %v1680 = vadd.f32 0.0, %v1679
        %v1681 = vpop.f32.mrf.mxu0
        %1682 = vdwg.mxu0
        %v1683 = vmul.f32 %v1680, 0.03125
        %v1684 = vadd.f32 %v1683, 1e-05
        %v1685 = vrsqrt.pop %v1684
        %v1686 = vld [vmem:[%s6] sm:$0xff]
        %v1688 = vcombine.high %v1686, %v1686
        %v1690 = vsel %vm803, %v1685, 0
        %v1692 = vsel %vm807, %v1686, 0
        %v1694 = vsel %vm807, %v1688, 0
        %1696 = vmatprep.subr.mxu0 0.0
        %1697 = vmatpush1.msra.mxu0 0.0
        %1698 = vmatprep.subr.mxu0 0.0
        %1699 = vmatpush1.msra.mxu0 0.0
        %1700 = vmatprep.subr.mxu0 0.0
        %1701 = vmatpush1.msra.mxu0 0.0
        %1702 = vmatprep.subr.mxu0 0.0
        %1703 = vmatpush1.msra.mxu0 0.0
        %1704 = vmatprep.subr.mxu0 0.0
        %1705 = vmatpush1.msra.mxu0 0.0
        %1706 = vmatprep.subr.mxu0 0.0
        %1707 = vmatpush1.msra.mxu0 0.0
        %1708 = vmatprep.subr.mxu0 0.0
        %1709 = vmatpush1.msra.mxu0 0.0
        %1710 = vmatprep.subr.mxu0 0.0
        %1711 = vmatpush1.msra.mxu0 0.0
        %1712 = vmatprep.subr.mxu0 0.0
        %1713 = vmatpush1.msra.mxu0 0.0
        %1714 = vmatprep.subr.mxu0 0.0
        %1715 = vmatpush1.msra.mxu0 0.0
        %1716 = vmatprep.subr.mxu0 0.0
        %1717 = vmatpush1.msra.mxu0 0.0
        %1718 = vmatprep.subr.mxu0 0.0
        %1719 = vmatpush1.msra.mxu0 0.0
        %1720 = vmatprep.subr.mxu0 0.0
        %1721 = vmatpush1.msra.mxu0 0.0
        %1722 = vmatprep.subr.mxu0 0.0
        %1723 = vmatpush1.msra.mxu0 0.0
        %1724 = vmatprep.subr.mxu0 0.0
        %1725 = vmatpush1.msra.mxu0 0.0
        %1726 = vmatprep.subr.mxu0 %v1694
        %1727 = vmatpush1.msra.mxu0 %v1692
        %1728 = vmatprep.subr.mxu0 0.0
        %1729 = vmatpush2.msra.mxu0 0.0
        %1730 = vmatprep.subr.mxu0 0.0
        %1731 = vmatpush2.msra.mxu0 0.0
        %1732 = vmatprep.subr.mxu0 0.0
        %1733 = vmatpush2.msra.mxu0 0.0
        %1734 = vmatprep.subr.mxu0 0.0
        %1735 = vmatpush2.msra.mxu0 0.0
        %1736 = vmatprep.subr.mxu0 0.0
        %1737 = vmatpush2.msra.mxu0 0.0
        %1738 = vmatprep.subr.mxu0 0.0
        %1739 = vmatpush2.msra.mxu0 0.0
        %1740 = vmatprep.subr.mxu0 0.0
        %1741 = vmatpush2.msra.mxu0 0.0
        %1742 = vmatprep.subr.mxu0 0.0
        %1743 = vmatpush2.msra.mxu0 0.0
        %1744 = vmatprep.subr.mxu0 0.0
        %1745 = vmatpush2.msra.mxu0 0.0
        %1746 = vmatprep.subr.mxu0 0.0
        %1747 = vmatpush2.msra.mxu0 0.0
        %1748 = vmatprep.subr.mxu0 0.0
        %1749 = vmatpush2.msra.mxu0 0.0
        %1750 = vmatprep.subr.mxu0 0.0
        %1751 = vmatpush2.msra.mxu0 0.0
        %1752 = vmatprep.subr.mxu0 0.0
        %1753 = vmatpush2.msra.mxu0 0.0
        %1754 = vmatprep.subr.mxu0 0.0
        %1755 = vmatpush2.msra.mxu0 0.0
        %1756 = vmatprep.subr.mxu0 0.0
        %1757 = vmatpush2.msra.mxu0 0.0
        %1758 = vmatprep.subr.mxu0 0.0
        %1759 = vmatpush2.msra.mxu0 0.0
        %1760 = vmatprep.mubr.f32.mxu0 0.0
        %1761 = vmatmul.mubr.f32.gmra.mxu0 %v1690
        %v1762 = vpop.f32.mrf.mxu0
        %v1763 = vadd.f32 0.0, %v1762
        %v1764 = vpop.f32.mrf.mxu0
        %v1765 = vadd.f32 0.0, %v1764
        %1766 = vdwg.mxu0
        %v1767 = vmul.f32 %v1577, %v1763
        %v1768 = vmul.f32 %v1578, %v1765
        %s1769 = sld [smem:[#allocation2 + $0x2]]
        %v1770 = vstv %s1769
        %v1771 = vmul.f32 %v447, %v1770
        %v1772 = vmul.f32 %v449, %v1770
        %s1773 = sld [smem:[#allocation2 + $0x82]]
        %v1774 = vstv %s1773
        %v1775 = vmul.f32 %v523, %v1774
        %v1776 = vmul.f32 %v525, %v1774
        %v1777 = vadd.f32 %v1771, %v1775
        %v1778 = vadd.f32 %v1772, %v1776
        %s1779 = sld [smem:[#allocation2 + $0x102]]
        %v1780 = vstv %s1779
        %v1781 = vmul.f32 %v599, %v1780
        %v1782 = vmul.f32 %v601, %v1780
        %v1783 = vadd.f32 %v1777, %v1781
        %v1784 = vadd.f32 %v1778, %v1782
        %s1785 = sld [smem:[#allocation2 + $0x182]]
        %v1786 = vstv %s1785
        %v1787 = vmul.f32 %v675, %v1786
        %v1788 = vmul.f32 %v677, %v1786
        %v1789 = vadd.f32 %v1783, %v1787
        %v1790 = vadd.f32 %v1784, %v1788
        %s1791 = scalar_lea.vmem %s7, 2
        %v1792 = vld [vmem:[%s1791] ss:$4 sm:$0x3]
        %v1794 = vlaneseq
        %v1795 = vshrl.u32 %v1794, 7
        %v1796 = vsub.s32 0, %v1795
        %v1797 = vrot.slane %v1792, %v1796
        %v1798 = vlaneseq
        %v1799 = vshrl.u32 %v1798, 7
        %v1800 = vsub.s32 1, %v1799
        %v1801 = vrot.slane %v1792, %v1800
        %v1804 = vadd.f32 %v1789, %v1797
        %v1805 = vadd.f32 %v1790, %v1801
        %v1806 = vmul.f32 %v1804, %v1804
        %v1807 = vmul.f32 %v1805, %v1805
        %v1808 = vld [vmem:[%s3] sm:$0xff]
        %v1809 = vld [vmem:[%s3 + $0x8] sm:$0xff]
        %v1810 = vld [vmem:[%s3 + $0x10] sm:$0xff]
        %v1811 = vld [vmem:[%s3 + $0x18] sm:$0xff]
        %v1812 = vld [vmem:[%s3 + $0x20] sm:$0xff]
        %v1813 = vld [vmem:[%s3 + $0x28] sm:$0xff]
        %v1814 = vld [vmem:[%s3 + $0x30] sm:$0xff]
        %v1815 = vld [vmem:[%s3 + $0x38] sm:$0xff]
        %v1816 = vld [vmem:[%s3 + $0x40] sm:$0xff]
        %v1817 = vld [vmem:[%s3 + $0x48] sm:$0xff]
        %v1818 = vld [vmem:[%s3 + $0x50] sm:$0xff]
        %v1819 = vld [vmem:[%s3 + $0x58] sm:$0xff]
        %v1820 = vld [vmem:[%s3 + $0x60] sm:$0xff]
        %v1821 = vld [vmem:[%s3 + $0x68] sm:$0xff]
        %v1822 = vld [vmem:[%s3 + $0x70] sm:$0xff]
        %v1823 = vld [vmem:[%s3 + $0x78] sm:$0xff]
        %v1824 = vld [vmem:[%s3 + $0x80] sm:$0xff]
        %v1825 = vld [vmem:[%s3 + $0x88] sm:$0xff]
        %v1826 = vld [vmem:[%s3 + $0x90] sm:$0xff]
        %v1827 = vld [vmem:[%s3 + $0x98] sm:$0xff]
        %v1828 = vld [vmem:[%s3 + $0xa0] sm:$0xff]
        %v1829 = vld [vmem:[%s3 + $0xa8] sm:$0xff]
        %v1830 = vld [vmem:[%s3 + $0xb0] sm:$0xff]
        %v1831 = vld [vmem:[%s3 + $0xb8] sm:$0xff]
        %v1832 = vld [vmem:[%s3 + $0xc0] sm:$0xff]
        %v1833 = vld [vmem:[%s3 + $0xc8] sm:$0xff]
        %v1834 = vld [vmem:[%s3 + $0xd0] sm:$0xff]
        %v1835 = vld [vmem:[%s3 + $0xd8] sm:$0xff]
        %v1836 = vld [vmem:[%s3 + $0xe0] sm:$0xff]
        %v1837 = vld [vmem:[%s3 + $0xe8] sm:$0xff]
        %v1838 = vld [vmem:[%s3 + $0xf0] sm:$0xff]
        %v1839 = vld [vmem:[%s3 + $0xf8] sm:$0xff]
        %1840 = vmatprep.subr.mxu0 0.0
        %1841 = vmatpush1.msra.mxu0 %v1823
        %1842 = vmatprep.subr.mxu0 0.0
        %1843 = vmatpush1.msra.mxu0 %v1822
        %1844 = vmatprep.subr.mxu0 0.0
        %1845 = vmatpush1.msra.mxu0 %v1821
        %1846 = vmatprep.subr.mxu0 0.0
        %1847 = vmatpush1.msra.mxu0 %v1820
        %1848 = vmatprep.subr.mxu0 0.0
        %1849 = vmatpush1.msra.mxu0 %v1819
        %1850 = vmatprep.subr.mxu0 0.0
        %1851 = vmatpush1.msra.mxu0 %v1818
        %1852 = vmatprep.subr.mxu0 0.0
        %1853 = vmatpush1.msra.mxu0 %v1817
        %1854 = vmatprep.subr.mxu0 0.0
        %1855 = vmatpush1.msra.mxu0 %v1816
        %1856 = vmatprep.subr.mxu0 0.0
        %1857 = vmatpush1.msra.mxu0 %v1815
        %1858 = vmatprep.subr.mxu0 0.0
        %1859 = vmatpush1.msra.mxu0 %v1814
        %1860 = vmatprep.subr.mxu0 0.0
        %1861 = vmatpush1.msra.mxu0 %v1813
        %1862 = vmatprep.subr.mxu0 0.0
        %1863 = vmatpush1.msra.mxu0 %v1812
        %1864 = vmatprep.subr.mxu0 0.0
        %1865 = vmatpush1.msra.mxu0 %v1811
        %1866 = vmatprep.subr.mxu0 0.0
        %1867 = vmatpush1.msra.mxu0 %v1810
        %1868 = vmatprep.subr.mxu0 0.0
        %1869 = vmatpush1.msra.mxu0 %v1809
        %1870 = vmatprep.subr.mxu0 0.0
        %1871 = vmatpush1.msra.mxu0 %v1808
        %1872 = vmatprep.subr.mxu0 0.0
        %1873 = vmatpush2.msra.mxu0 %v1839
        %1874 = vmatprep.subr.mxu0 0.0
        %1875 = vmatpush2.msra.mxu0 %v1838
        %1876 = vmatprep.subr.mxu0 0.0
        %1877 = vmatpush2.msra.mxu0 %v1837
        %1878 = vmatprep.subr.mxu0 0.0
        %1879 = vmatpush2.msra.mxu0 %v1836
        %1880 = vmatprep.subr.mxu0 0.0
        %1881 = vmatpush2.msra.mxu0 %v1835
        %1882 = vmatprep.subr.mxu0 0.0
        %1883 = vmatpush2.msra.mxu0 %v1834
        %1884 = vmatprep.subr.mxu0 0.0
        %1885 = vmatpush2.msra.mxu0 %v1833
        %1886 = vmatprep.subr.mxu0 0.0
        %1887 = vmatpush2.msra.mxu0 %v1832
        %1888 = vmatprep.subr.mxu0 0.0
        %1889 = vmatpush2.msra.mxu0 %v1831
        %1890 = vmatprep.subr.mxu0 0.0
        %1891 = vmatpush2.msra.mxu0 %v1830
        %1892 = vmatprep.subr.mxu0 0.0
        %1893 = vmatpush2.msra.mxu0 %v1829
        %1894 = vmatprep.subr.mxu0 0.0
        %1895 = vmatpush2.msra.mxu0 %v1828
        %1896 = vmatprep.subr.mxu0 0.0
        %1897 = vmatpush2.msra.mxu0 %v1827
        %1898 = vmatprep.subr.mxu0 0.0
        %1899 = vmatpush2.msra.mxu0 %v1826
        %1900 = vmatprep.subr.mxu0 0.0
        %1901 = vmatpush2.msra.mxu0 %v1825
        %1902 = vmatprep.subr.mxu0 0.0
        %1903 = vmatpush2.msra.mxu0 %v1824
        %1904 = vmatprep.mubr.f32.mxu0 %v1807
        %1905 = vmatmul.mubr.f32.gmra.mxu0 %v1806
        %v1906 = vpop.f32.mrf.mxu0
        %v1907 = vadd.f32 0.0, %v1906
        %v1908 = vpop.f32.mrf.mxu0
        %1909 = vdwg.mxu0
        %v1910 = vmul.f32 %v1907, 0.03125
        %v1911 = vadd.f32 %v1910, 1e-05
        %v1912 = vrsqrt.pop %v1911
        %v1913 = vld [vmem:[%s5] sm:$0xff]
        %v1915 = vcombine.high %v1913, %v1913
        %v1917 = vsel %vm803, %v1912, 0
        %v1919 = vsel %vm807, %v1913, 0
        %v1921 = vsel %vm807, %v1915, 0
        %1923 = vmatprep.subr.mxu0 0.0
        %1924 = vmatpush1.msra.mxu0 0.0
        %1925 = vmatprep.subr.mxu0 0.0
        %1926 = vmatpush1.msra.mxu0 0.0
        %1927 = vmatprep.subr.mxu0 0.0
        %1928 = vmatpush1.msra.mxu0 0.0
        %1929 = vmatprep.subr.mxu0 0.0
        %1930 = vmatpush1.msra.mxu0 0.0
        %1931 = vmatprep.subr.mxu0 0.0
        %1932 = vmatpush1.msra.mxu0 0.0
        %1933 = vmatprep.subr.mxu0 0.0
        %1934 = vmatpush1.msra.mxu0 0.0
        %1935 = vmatprep.subr.mxu0 0.0
        %1936 = vmatpush1.msra.mxu0 0.0
        %1937 = vmatprep.subr.mxu0 0.0
        %1938 = vmatpush1.msra.mxu0 0.0
        %1939 = vmatprep.subr.mxu0 0.0
        %1940 = vmatpush1.msra.mxu0 0.0
        %1941 = vmatprep.subr.mxu0 0.0
        %1942 = vmatpush1.msra.mxu0 0.0
        %1943 = vmatprep.subr.mxu0 0.0
        %1944 = vmatpush1.msra.mxu0 0.0
        %1945 = vmatprep.subr.mxu0 0.0
        %1946 = vmatpush1.msra.mxu0 0.0
        %1947 = vmatprep.subr.mxu0 0.0
        %1948 = vmatpush1.msra.mxu0 0.0
        %1949 = vmatprep.subr.mxu0 0.0
        %1950 = vmatpush1.msra.mxu0 0.0
        %1951 = vmatprep.subr.mxu0 0.0
        %1952 = vmatpush1.msra.mxu0 0.0
        %1953 = vmatprep.subr.mxu0 %v1921
        %1954 = vmatpush1.msra.mxu0 %v1919
        %1955 = vmatprep.subr.mxu0 0.0
        %1956 = vmatpush2.msra.mxu0 0.0
        %1957 = vmatprep.subr.mxu0 0.0
        %1958 = vmatpush2.msra.mxu0 0.0
        %1959 = vmatprep.subr.mxu0 0.0
        %1960 = vmatpush2.msra.mxu0 0.0
        %1961 = vmatprep.subr.mxu0 0.0
        %1962 = vmatpush2.msra.mxu0 0.0
        %1963 = vmatprep.subr.mxu0 0.0
        %1964 = vmatpush2.msra.mxu0 0.0
        %1965 = vmatprep.subr.mxu0 0.0
        %1966 = vmatpush2.msra.mxu0 0.0
        %1967 = vmatprep.subr.mxu0 0.0
        %1968 = vmatpush2.msra.mxu0 0.0
        %1969 = vmatprep.subr.mxu0 0.0
        %1970 = vmatpush2.msra.mxu0 0.0
        %1971 = vmatprep.subr.mxu0 0.0
        %1972 = vmatpush2.msra.mxu0 0.0
        %1973 = vmatprep.subr.mxu0 0.0
        %1974 = vmatpush2.msra.mxu0 0.0
        %1975 = vmatprep.subr.mxu0 0.0
        %1976 = vmatpush2.msra.mxu0 0.0
        %1977 = vmatprep.subr.mxu0 0.0
        %1978 = vmatpush2.msra.mxu0 0.0
        %1979 = vmatprep.subr.mxu0 0.0
        %1980 = vmatpush2.msra.mxu0 0.0
        %1981 = vmatprep.subr.mxu0 0.0
        %1982 = vmatpush2.msra.mxu0 0.0
        %1983 = vmatprep.subr.mxu0 0.0
        %1984 = vmatpush2.msra.mxu0 0.0
        %1985 = vmatprep.subr.mxu0 0.0
        %1986 = vmatpush2.msra.mxu0 0.0
        %1987 = vmatprep.mubr.f32.mxu0 0.0
        %1988 = vmatmul.mubr.f32.gmra.mxu0 %v1917
        %v1989 = vpop.f32.mrf.mxu0
        %v1990 = vadd.f32 0.0, %v1989
        %v1991 = vpop.f32.mrf.mxu0
        %v1992 = vadd.f32 0.0, %v1991
        %1993 = vdwg.mxu0
        %v1994 = vmul.f32 %v1804, %v1990
        %v1995 = vmul.f32 %v1805, %v1992
        %v1996 = vadd.f32 %v1767, %v1994
        %v1997 = vadd.f32 %v1768, %v1995
        %v2000 = vcombine.low %v1996, %v1997
        %v2002 = vunpack.c.l.s4 1966171168
        %v2003 = vunpack.c.0.s8 %v2002
        %v2004 = vlaneseq
        %v2005 = vshrl.u32 %v2004, 7
        %v2006 = vsub.s32 %v2003, %v2005
        %v2007 = vrot.slane %v2000, %v2006
        %v2009 = vunpack.c.l.s4 1966171168
        %v2010 = vunpack.c.0.s8 %v2009
        %v2011 = vlaneseq
        %v2012 = vshrl.u32 %v2011, 7
        %v2013 = vsub.s32 %v2010, %v2012
        %v2014 = vrot.slane %v2007, %v2013
        %s2016 = scalar_lea.vmem %s359, 4 [#allocation5]
        %2017 = vst.msk [vmem:[%s2016] sm:$0x3] %vm1134, %v2014
        %v2018 = vadd.f32 %v675, %v684
        %v2019 = vadd.f32 %v677, %v688
        %v2020 = vmul.f32 %v2018, %v2018
        %v2021 = vmul.f32 %v2019, %v2019
        %v2022 = vld [vmem:[%s4] sm:$0xff]
        %v2023 = vld [vmem:[%s4 + $0x8] sm:$0xff]
        %v2024 = vld [vmem:[%s4 + $0x10] sm:$0xff]
        %v2025 = vld [vmem:[%s4 + $0x18] sm:$0xff]
        %v2026 = vld [vmem:[%s4 + $0x20] sm:$0xff]
        %v2027 = vld [vmem:[%s4 + $0x28] sm:$0xff]
        %v2028 = vld [vmem:[%s4 + $0x30] sm:$0xff]
        %v2029 = vld [vmem:[%s4 + $0x38] sm:$0xff]
        %v2030 = vld [vmem:[%s4 + $0x40] sm:$0xff]
        %v2031 = vld [vmem:[%s4 + $0x48] sm:$0xff]
        %v2032 = vld [vmem:[%s4 + $0x50] sm:$0xff]
        %v2033 = vld [vmem:[%s4 + $0x58] sm:$0xff]
        %v2034 = vld [vmem:[%s4 + $0x60] sm:$0xff]
        %v2035 = vld [vmem:[%s4 + $0x68] sm:$0xff]
        %v2036 = vld [vmem:[%s4 + $0x70] sm:$0xff]
        %v2037 = vld [vmem:[%s4 + $0x78] sm:$0xff]
        %v2038 = vld [vmem:[%s4 + $0x80] sm:$0xff]
        %v2039 = vld [vmem:[%s4 + $0x88] sm:$0xff]
        %v2040 = vld [vmem:[%s4 + $0x90] sm:$0xff]
        %v2041 = vld [vmem:[%s4 + $0x98] sm:$0xff]
        %v2042 = vld [vmem:[%s4 + $0xa0] sm:$0xff]
        %v2043 = vld [vmem:[%s4 + $0xa8] sm:$0xff]
        %v2044 = vld [vmem:[%s4 + $0xb0] sm:$0xff]
        %v2045 = vld [vmem:[%s4 + $0xb8] sm:$0xff]
        %v2046 = vld [vmem:[%s4 + $0xc0] sm:$0xff]
        %v2047 = vld [vmem:[%s4 + $0xc8] sm:$0xff]
        %v2048 = vld [vmem:[%s4 + $0xd0] sm:$0xff]
        %v2049 = vld [vmem:[%s4 + $0xd8] sm:$0xff]
        %v2050 = vld [vmem:[%s4 + $0xe0] sm:$0xff]
        %v2051 = vld [vmem:[%s4 + $0xe8] sm:$0xff]
        %v2052 = vld [vmem:[%s4 + $0xf0] sm:$0xff]
        %v2053 = vld [vmem:[%s4 + $0xf8] sm:$0xff]
        %2054 = vmatprep.subr.mxu0 0.0
        %2055 = vmatpush1.msra.mxu0 %v2037
        %2056 = vmatprep.subr.mxu0 0.0
        %2057 = vmatpush1.msra.mxu0 %v2036
        %2058 = vmatprep.subr.mxu0 0.0
        %2059 = vmatpush1.msra.mxu0 %v2035
        %2060 = vmatprep.subr.mxu0 0.0
        %2061 = vmatpush1.msra.mxu0 %v2034
        %2062 = vmatprep.subr.mxu0 0.0
        %2063 = vmatpush1.msra.mxu0 %v2033
        %2064 = vmatprep.subr.mxu0 0.0
        %2065 = vmatpush1.msra.mxu0 %v2032
        %2066 = vmatprep.subr.mxu0 0.0
        %2067 = vmatpush1.msra.mxu0 %v2031
        %2068 = vmatprep.subr.mxu0 0.0
        %2069 = vmatpush1.msra.mxu0 %v2030
        %2070 = vmatprep.subr.mxu0 0.0
        %2071 = vmatpush1.msra.mxu0 %v2029
        %2072 = vmatprep.subr.mxu0 0.0
        %2073 = vmatpush1.msra.mxu0 %v2028
        %2074 = vmatprep.subr.mxu0 0.0
        %2075 = vmatpush1.msra.mxu0 %v2027
        %2076 = vmatprep.subr.mxu0 0.0
        %2077 = vmatpush1.msra.mxu0 %v2026
        %2078 = vmatprep.subr.mxu0 0.0
        %2079 = vmatpush1.msra.mxu0 %v2025
        %2080 = vmatprep.subr.mxu0 0.0
        %2081 = vmatpush1.msra.mxu0 %v2024
        %2082 = vmatprep.subr.mxu0 0.0
        %2083 = vmatpush1.msra.mxu0 %v2023
        %2084 = vmatprep.subr.mxu0 0.0
        %2085 = vmatpush1.msra.mxu0 %v2022
        %2086 = vmatprep.subr.mxu0 0.0
        %2087 = vmatpush2.msra.mxu0 %v2053
        %2088 = vmatprep.subr.mxu0 0.0
        %2089 = vmatpush2.msra.mxu0 %v2052
        %2090 = vmatprep.subr.mxu0 0.0
        %2091 = vmatpush2.msra.mxu0 %v2051
        %2092 = vmatprep.subr.mxu0 0.0
        %2093 = vmatpush2.msra.mxu0 %v2050
        %2094 = vmatprep.subr.mxu0 0.0
        %2095 = vmatpush2.msra.mxu0 %v2049
        %2096 = vmatprep.subr.mxu0 0.0
        %2097 = vmatpush2.msra.mxu0 %v2048
        %2098 = vmatprep.subr.mxu0 0.0
        %2099 = vmatpush2.msra.mxu0 %v2047
        %2100 = vmatprep.subr.mxu0 0.0
        %2101 = vmatpush2.msra.mxu0 %v2046
        %2102 = vmatprep.subr.mxu0 0.0
        %2103 = vmatpush2.msra.mxu0 %v2045
        %2104 = vmatprep.subr.mxu0 0.0
        %2105 = vmatpush2.msra.mxu0 %v2044
        %2106 = vmatprep.subr.mxu0 0.0
        %2107 = vmatpush2.msra.mxu0 %v2043
        %2108 = vmatprep.subr.mxu0 0.0
        %2109 = vmatpush2.msra.mxu0 %v2042
        %2110 = vmatprep.subr.mxu0 0.0
        %2111 = vmatpush2.msra.mxu0 %v2041
        %2112 = vmatprep.subr.mxu0 0.0
        %2113 = vmatpush2.msra.mxu0 %v2040
        %2114 = vmatprep.subr.mxu0 0.0
        %2115 = vmatpush2.msra.mxu0 %v2039
        %2116 = vmatprep.subr.mxu0 0.0
        %2117 = vmatpush2.msra.mxu0 %v2038
        %2118 = vmatprep.mubr.f32.mxu0 %v2021
        %2119 = vmatmul.mubr.f32.gmra.mxu0 %v2020
        %v2120 = vpop.f32.mrf.mxu0
        %v2121 = vadd.f32 0.0, %v2120
        %v2122 = vpop.f32.mrf.mxu0
        %2123 = vdwg.mxu0
        %v2124 = vmul.f32 %v2121, 0.03125
        %v2125 = vadd.f32 %v2124, 1e-05
        %v2126 = vrsqrt.pop %v2125
        %v2127 = vld [vmem:[%s6] sm:$0xff]
        %v2129 = vcombine.high %v2127, %v2127
        %v2131 = vsel %vm803, %v2126, 0
        %v2133 = vsel %vm807, %v2127, 0
        %v2135 = vsel %vm807, %v2129, 0
        %2137 = vmatprep.subr.mxu0 0.0
        %2138 = vmatpush1.msra.mxu0 0.0
        %2139 = vmatprep.subr.mxu0 0.0
        %2140 = vmatpush1.msra.mxu0 0.0
        %2141 = vmatprep.subr.mxu0 0.0
        %2142 = vmatpush1.msra.mxu0 0.0
        %2143 = vmatprep.subr.mxu0 0.0
        %2144 = vmatpush1.msra.mxu0 0.0
        %2145 = vmatprep.subr.mxu0 0.0
        %2146 = vmatpush1.msra.mxu0 0.0
        %2147 = vmatprep.subr.mxu0 0.0
        %2148 = vmatpush1.msra.mxu0 0.0
        %2149 = vmatprep.subr.mxu0 0.0
        %2150 = vmatpush1.msra.mxu0 0.0
        %2151 = vmatprep.subr.mxu0 0.0
        %2152 = vmatpush1.msra.mxu0 0.0
        %2153 = vmatprep.subr.mxu0 0.0
        %2154 = vmatpush1.msra.mxu0 0.0
        %2155 = vmatprep.subr.mxu0 0.0
        %2156 = vmatpush1.msra.mxu0 0.0
        %2157 = vmatprep.subr.mxu0 0.0
        %2158 = vmatpush1.msra.mxu0 0.0
        %2159 = vmatprep.subr.mxu0 0.0
        %2160 = vmatpush1.msra.mxu0 0.0
        %2161 = vmatprep.subr.mxu0 0.0
        %2162 = vmatpush1.msra.mxu0 0.0
        %2163 = vmatprep.subr.mxu0 0.0
        %2164 = vmatpush1.msra.mxu0 0.0
        %2165 = vmatprep.subr.mxu0 0.0
        %2166 = vmatpush1.msra.mxu0 0.0
        %2167 = vmatprep.subr.mxu0 %v2135
        %2168 = vmatpush1.msra.mxu0 %v2133
        %2169 = vmatprep.subr.mxu0 0.0
        %2170 = vmatpush2.msra.mxu0 0.0
        %2171 = vmatprep.subr.mxu0 0.0
        %2172 = vmatpush2.msra.mxu0 0.0
        %2173 = vmatprep.subr.mxu0 0.0
        %2174 = vmatpush2.msra.mxu0 0.0
        %2175 = vmatprep.subr.mxu0 0.0
        %2176 = vmatpush2.msra.mxu0 0.0
        %2177 = vmatprep.subr.mxu0 0.0
        %2178 = vmatpush2.msra.mxu0 0.0
        %2179 = vmatprep.subr.mxu0 0.0
        %2180 = vmatpush2.msra.mxu0 0.0
        %2181 = vmatprep.subr.mxu0 0.0
        %2182 = vmatpush2.msra.mxu0 0.0
        %2183 = vmatprep.subr.mxu0 0.0
        %2184 = vmatpush2.msra.mxu0 0.0
        %2185 = vmatprep.subr.mxu0 0.0
        %2186 = vmatpush2.msra.mxu0 0.0
        %2187 = vmatprep.subr.mxu0 0.0
        %2188 = vmatpush2.msra.mxu0 0.0
        %2189 = vmatprep.subr.mxu0 0.0
        %2190 = vmatpush2.msra.mxu0 0.0
        %2191 = vmatprep.subr.mxu0 0.0
        %2192 = vmatpush2.msra.mxu0 0.0
        %2193 = vmatprep.subr.mxu0 0.0
        %2194 = vmatpush2.msra.mxu0 0.0
        %2195 = vmatprep.subr.mxu0 0.0
        %2196 = vmatpush2.msra.mxu0 0.0
        %2197 = vmatprep.subr.mxu0 0.0
        %2198 = vmatpush2.msra.mxu0 0.0
        %2199 = vmatprep.subr.mxu0 0.0
        %2200 = vmatpush2.msra.mxu0 0.0
        %2201 = vmatprep.mubr.f32.mxu0 0.0
        %2202 = vmatmul.mubr.f32.gmra.mxu0 %v2131
        %v2203 = vpop.f32.mrf.mxu0
        %v2204 = vadd.f32 0.0, %v2203
        %v2205 = vpop.f32.mrf.mxu0
        %v2206 = vadd.f32 0.0, %v2205
        %2207 = vdwg.mxu0
        %v2208 = vmul.f32 %v2018, %v2204
        %v2209 = vmul.f32 %v2019, %v2206
        %s2210 = sld [smem:[#allocation2 + $0x3]]
        %v2211 = vstv %s2210
        %v2212 = vmul.f32 %v447, %v2211
        %v2213 = vmul.f32 %v449, %v2211
        %s2214 = sld [smem:[#allocation2 + $0x83]]
        %v2215 = vstv %s2214
        %v2216 = vmul.f32 %v523, %v2215
        %v2217 = vmul.f32 %v525, %v2215
        %v2218 = vadd.f32 %v2212, %v2216
        %v2219 = vadd.f32 %v2213, %v2217
        %s2220 = sld [smem:[#allocation2 + $0x103]]
        %v2221 = vstv %s2220
        %v2222 = vmul.f32 %v599, %v2221
        %v2223 = vmul.f32 %v601, %v2221
        %v2224 = vadd.f32 %v2218, %v2222
        %v2225 = vadd.f32 %v2219, %v2223
        %s2226 = sld [smem:[#allocation2 + $0x183]]
        %v2227 = vstv %s2226
        %v2228 = vmul.f32 %v675, %v2227
        %v2229 = vmul.f32 %v677, %v2227
        %v2230 = vadd.f32 %v2224, %v2228
        %v2231 = vadd.f32 %v2225, %v2229
        %s2232 = scalar_lea.vmem %s7, 3
        %v2233 = vld [vmem:[%s2232] ss:$4 sm:$0x3]
        %v2235 = vlaneseq
        %v2236 = vshrl.u32 %v2235, 7
        %v2237 = vsub.s32 0, %v2236
        %v2238 = vrot.slane %v2233, %v2237
        %v2239 = vlaneseq
        %v2240 = vshrl.u32 %v2239, 7
        %v2241 = vsub.s32 1, %v2240
        %v2242 = vrot.slane %v2233, %v2241
        %v2245 = vadd.f32 %v2230, %v2238
        %v2246 = vadd.f32 %v2231, %v2242
        %v2247 = vmul.f32 %v2245, %v2245
        %v2248 = vmul.f32 %v2246, %v2246
        %v2249 = vld [vmem:[%s3] sm:$0xff]
        %v2250 = vld [vmem:[%s3 + $0x8] sm:$0xff]
        %v2251 = vld [vmem:[%s3 + $0x10] sm:$0xff]
        %v2252 = vld [vmem:[%s3 + $0x18] sm:$0xff]
        %v2253 = vld [vmem:[%s3 + $0x20] sm:$0xff]
        %v2254 = vld [vmem:[%s3 + $0x28] sm:$0xff]
        %v2255 = vld [vmem:[%s3 + $0x30] sm:$0xff]
        %v2256 = vld [vmem:[%s3 + $0x38] sm:$0xff]
        %v2257 = vld [vmem:[%s3 + $0x40] sm:$0xff]
        %v2258 = vld [vmem:[%s3 + $0x48] sm:$0xff]
        %v2259 = vld [vmem:[%s3 + $0x50] sm:$0xff]
        %v2260 = vld [vmem:[%s3 + $0x58] sm:$0xff]
        %v2261 = vld [vmem:[%s3 + $0x60] sm:$0xff]
        %v2262 = vld [vmem:[%s3 + $0x68] sm:$0xff]
        %v2263 = vld [vmem:[%s3 + $0x70] sm:$0xff]
        %v2264 = vld [vmem:[%s3 + $0x78] sm:$0xff]
        %v2265 = vld [vmem:[%s3 + $0x80] sm:$0xff]
        %v2266 = vld [vmem:[%s3 + $0x88] sm:$0xff]
        %v2267 = vld [vmem:[%s3 + $0x90] sm:$0xff]
        %v2268 = vld [vmem:[%s3 + $0x98] sm:$0xff]
        %v2269 = vld [vmem:[%s3 + $0xa0] sm:$0xff]
        %v2270 = vld [vmem:[%s3 + $0xa8] sm:$0xff]
        %v2271 = vld [vmem:[%s3 + $0xb0] sm:$0xff]
        %v2272 = vld [vmem:[%s3 + $0xb8] sm:$0xff]
        %v2273 = vld [vmem:[%s3 + $0xc0] sm:$0xff]
        %v2274 = vld [vmem:[%s3 + $0xc8] sm:$0xff]
        %v2275 = vld [vmem:[%s3 + $0xd0] sm:$0xff]
        %v2276 = vld [vmem:[%s3 + $0xd8] sm:$0xff]
        %v2277 = vld [vmem:[%s3 + $0xe0] sm:$0xff]
        %v2278 = vld [vmem:[%s3 + $0xe8] sm:$0xff]
        %v2279 = vld [vmem:[%s3 + $0xf0] sm:$0xff]
        %v2280 = vld [vmem:[%s3 + $0xf8] sm:$0xff]
        %2281 = vmatprep.subr.mxu0 0.0
        %2282 = vmatpush1.msra.mxu0 %v2264
        %2283 = vmatprep.subr.mxu0 0.0
        %2284 = vmatpush1.msra.mxu0 %v2263
        %2285 = vmatprep.subr.mxu0 0.0
        %2286 = vmatpush1.msra.mxu0 %v2262
        %2287 = vmatprep.subr.mxu0 0.0
        %2288 = vmatpush1.msra.mxu0 %v2261
        %2289 = vmatprep.subr.mxu0 0.0
        %2290 = vmatpush1.msra.mxu0 %v2260
        %2291 = vmatprep.subr.mxu0 0.0
        %2292 = vmatpush1.msra.mxu0 %v2259
        %2293 = vmatprep.subr.mxu0 0.0
        %2294 = vmatpush1.msra.mxu0 %v2258
        %2295 = vmatprep.subr.mxu0 0.0
        %2296 = vmatpush1.msra.mxu0 %v2257
        %2297 = vmatprep.subr.mxu0 0.0
        %2298 = vmatpush1.msra.mxu0 %v2256
        %2299 = vmatprep.subr.mxu0 0.0
        %2300 = vmatpush1.msra.mxu0 %v2255
        %2301 = vmatprep.subr.mxu0 0.0
        %2302 = vmatpush1.msra.mxu0 %v2254
        %2303 = vmatprep.subr.mxu0 0.0
        %2304 = vmatpush1.msra.mxu0 %v2253
        %2305 = vmatprep.subr.mxu0 0.0
        %2306 = vmatpush1.msra.mxu0 %v2252
        %2307 = vmatprep.subr.mxu0 0.0
        %2308 = vmatpush1.msra.mxu0 %v2251
        %2309 = vmatprep.subr.mxu0 0.0
        %2310 = vmatpush1.msra.mxu0 %v2250
        %2311 = vmatprep.subr.mxu0 0.0
        %2312 = vmatpush1.msra.mxu0 %v2249
        %2313 = vmatprep.subr.mxu0 0.0
        %2314 = vmatpush2.msra.mxu0 %v2280
        %2315 = vmatprep.subr.mxu0 0.0
        %2316 = vmatpush2.msra.mxu0 %v2279
        %2317 = vmatprep.subr.mxu0 0.0
        %2318 = vmatpush2.msra.mxu0 %v2278
        %2319 = vmatprep.subr.mxu0 0.0
        %2320 = vmatpush2.msra.mxu0 %v2277
        %2321 = vmatprep.subr.mxu0 0.0
        %2322 = vmatpush2.msra.mxu0 %v2276
        %2323 = vmatprep.subr.mxu0 0.0
        %2324 = vmatpush2.msra.mxu0 %v2275
        %2325 = vmatprep.subr.mxu0 0.0
        %2326 = vmatpush2.msra.mxu0 %v2274
        %2327 = vmatprep.subr.mxu0 0.0
        %2328 = vmatpush2.msra.mxu0 %v2273
        %2329 = vmatprep.subr.mxu0 0.0
        %2330 = vmatpush2.msra.mxu0 %v2272
        %2331 = vmatprep.subr.mxu0 0.0
        %2332 = vmatpush2.msra.mxu0 %v2271
        %2333 = vmatprep.subr.mxu0 0.0
        %2334 = vmatpush2.msra.mxu0 %v2270
        %2335 = vmatprep.subr.mxu0 0.0
        %2336 = vmatpush2.msra.mxu0 %v2269
        %2337 = vmatprep.subr.mxu0 0.0
        %2338 = vmatpush2.msra.mxu0 %v2268
        %2339 = vmatprep.subr.mxu0 0.0
        %2340 = vmatpush2.msra.mxu0 %v2267
        %2341 = vmatprep.subr.mxu0 0.0
        %2342 = vmatpush2.msra.mxu0 %v2266
        %2343 = vmatprep.subr.mxu0 0.0
        %2344 = vmatpush2.msra.mxu0 %v2265
        %2345 = vmatprep.mubr.f32.mxu0 %v2248
        %2346 = vmatmul.mubr.f32.gmra.mxu0 %v2247
        %v2347 = vpop.f32.mrf.mxu0
        %v2348 = vadd.f32 0.0, %v2347
        %v2349 = vpop.f32.mrf.mxu0
        %2350 = vdwg.mxu0
        %v2351 = vmul.f32 %v2348, 0.03125
        %v2352 = vadd.f32 %v2351, 1e-05
        %v2353 = vrsqrt.pop %v2352
        %v2354 = vld [vmem:[%s5] sm:$0xff]
        %v2356 = vcombine.high %v2354, %v2354
        %v2358 = vsel %vm803, %v2353, 0
        %v2360 = vsel %vm807, %v2354, 0
        %v2362 = vsel %vm807, %v2356, 0
        %2364 = vmatprep.subr.mxu0 0.0
        %2365 = vmatpush1.msra.mxu0 0.0
        %2366 = vmatprep.subr.mxu0 0.0
        %2367 = vmatpush1.msra.mxu0 0.0
        %2368 = vmatprep.subr.mxu0 0.0
        %2369 = vmatpush1.msra.mxu0 0.0
        %2370 = vmatprep.subr.mxu0 0.0
        %2371 = vmatpush1.msra.mxu0 0.0
        %2372 = vmatprep.subr.mxu0 0.0
        %2373 = vmatpush1.msra.mxu0 0.0
        %2374 = vmatprep.subr.mxu0 0.0
        %2375 = vmatpush1.msra.mxu0 0.0
        %2376 = vmatprep.subr.mxu0 0.0
        %2377 = vmatpush1.msra.mxu0 0.0
        %2378 = vmatprep.subr.mxu0 0.0
        %2379 = vmatpush1.msra.mxu0 0.0
        %2380 = vmatprep.subr.mxu0 0.0
        %2381 = vmatpush1.msra.mxu0 0.0
        %2382 = vmatprep.subr.mxu0 0.0
        %2383 = vmatpush1.msra.mxu0 0.0
        %2384 = vmatprep.subr.mxu0 0.0
        %2385 = vmatpush1.msra.mxu0 0.0
        %2386 = vmatprep.subr.mxu0 0.0
        %2387 = vmatpush1.msra.mxu0 0.0
        %2388 = vmatprep.subr.mxu0 0.0
        %2389 = vmatpush1.msra.mxu0 0.0
        %2390 = vmatprep.subr.mxu0 0.0
        %2391 = vmatpush1.msra.mxu0 0.0
        %2392 = vmatprep.subr.mxu0 0.0
        %2393 = vmatpush1.msra.mxu0 0.0
        %2394 = vmatprep.subr.mxu0 %v2362
        %2395 = vmatpush1.msra.mxu0 %v2360
        %2396 = vmatprep.subr.mxu0 0.0
        %2397 = vmatpush2.msra.mxu0 0.0
        %2398 = vmatprep.subr.mxu0 0.0
        %2399 = vmatpush2.msra.mxu0 0.0
        %2400 = vmatprep.subr.mxu0 0.0
        %2401 = vmatpush2.msra.mxu0 0.0
        %2402 = vmatprep.subr.mxu0 0.0
        %2403 = vmatpush2.msra.mxu0 0.0
        %2404 = vmatprep.subr.mxu0 0.0
        %2405 = vmatpush2.msra.mxu0 0.0
        %2406 = vmatprep.subr.mxu0 0.0
        %2407 = vmatpush2.msra.mxu0 0.0
        %2408 = vmatprep.subr.mxu0 0.0
        %2409 = vmatpush2.msra.mxu0 0.0
        %2410 = vmatprep.subr.mxu0 0.0
        %2411 = vmatpush2.msra.mxu0 0.0
        %2412 = vmatprep.subr.mxu0 0.0
        %2413 = vmatpush2.msra.mxu0 0.0
        %2414 = vmatprep.subr.mxu0 0.0
        %2415 = vmatpush2.msra.mxu0 0.0
        %2416 = vmatprep.subr.mxu0 0.0
        %2417 = vmatpush2.msra.mxu0 0.0
        %2418 = vmatprep.subr.mxu0 0.0
        %2419 = vmatpush2.msra.mxu0 0.0
        %2420 = vmatprep.subr.mxu0 0.0
        %2421 = vmatpush2.msra.mxu0 0.0
        %2422 = vmatprep.subr.mxu0 0.0
        %2423 = vmatpush2.msra.mxu0 0.0
        %2424 = vmatprep.subr.mxu0 0.0
        %2425 = vmatpush2.msra.mxu0 0.0
        %2426 = vmatprep.subr.mxu0 0.0
        %2427 = vmatpush2.msra.mxu0 0.0
        %2428 = vmatprep.mubr.f32.mxu0 0.0
        %2429 = vmatmul.mubr.f32.gmra.mxu0 %v2358
        %v2430 = vpop.f32.mrf.mxu0
        %v2431 = vadd.f32 0.0, %v2430
        %v2432 = vpop.f32.mrf.mxu0
        %v2433 = vadd.f32 0.0, %v2432
        %2434 = vdwg.mxu0
        %v2435 = vmul.f32 %v2245, %v2431
        %v2436 = vmul.f32 %v2246, %v2433
        %v2437 = vadd.f32 %v2208, %v2435
        %v2438 = vadd.f32 %v2209, %v2436
        %v2441 = vcombine.low %v2437, %v2438
        %v2443 = vunpack.c.l.s4 1966171168
        %v2444 = vunpack.c.0.s8 %v2443
        %v2445 = vlaneseq
        %v2446 = vshrl.u32 %v2445, 7
        %v2447 = vsub.s32 %v2444, %v2446
        %v2448 = vrot.slane %v2441, %v2447
        %v2450 = vunpack.c.l.s4 1966171168
        %v2451 = vunpack.c.0.s8 %v2450
        %v2452 = vlaneseq
        %v2453 = vshrl.u32 %v2452, 7
        %v2454 = vsub.s32 %v2451, %v2453
        %v2455 = vrot.slane %v2448, %v2454
        %s2457 = scalar_lea.vmem %s359, 6 [#allocation5]
        %2458 = vst.msk [vmem:[%s2457] sm:$0x3] %vm1134, %v2455
        %s2459 = sand.u32 %s242, 1
        %s2460 = scalar_lea.sflag [#allocation3], %s2459
        %s2461 = sand.u32 %s242, 1
        %s2462 = smul.addr %s2461, 8
        %s2463 = scalar_lea.vmem [#allocation5], %s2462
        // Predicated region
        $region61: #{tpu_custom_call.1} parent=55 // pred_check
          %p2464 = pneg %p252
        $region62: #{tpu_custom_call.1} parent=55 // pred_check_branch
          %2466 = sbr.rel (%p2464) target = $region64
        $region63: #{tpu_custom_call.1} parent=55 // pred_region
          %s2468 = ssub.s32 128, 128
          %2469 = vsyncadd %s2460, %s2468
          %s2470 = smul.addr %s29, 2
          %s2471 = smul.addr %s28, 8
          %s2472 = sadd.s32 %s2470, %s2471
          %s2473 = smul.addr %s2472, 16
          %s2474 = scalar_lea.hbm %s9, %s2473
          %s2475 = sshll.u32 %s2463, 4
          %s2476 = int_to_ptr.vmem [resolvable:$true] %s2475
          %2481 = dma.vmem_to_hbm [thread:$0]  %s2476, 128, %s2474, %s2460, 32, 32, 2
        $region64: #{tpu_custom_call.1} parent=55 // pred_fallthru
          _
      $region56: #{tpu_custom_call.1} parent=5 // pred_fallthru
        _
      %p2482 = scmp.le.s32.totalorder 2, %s19
      // Predicated region
      $region65: #{tpu_custom_call.1} parent=5 // pred_check
        %p2483 = pneg %p2482
      $region66: #{tpu_custom_call.1} parent=5 // pred_check_branch
        %2485 = sbr.rel (%p2483) target = $region68
      $region67: #{tpu_custom_call.1} parent=5 // pred_region
        %s2486 = ssub.s32 %s19, 2
        // Predicated region
        $region69: #{tpu_custom_call.1} parent=67 // pred_check
          %p2487 = pneg %p258
        $region70: #{tpu_custom_call.1} parent=67 // pred_check_branch
          %2489 = sbr.rel (%p2487) target = $region72
        $region71: #{tpu_custom_call.1} parent=67 // pred_region
          %s2490 = sand.u32 %s243, 1
          %s2491 = scalar_lea.sflag [#allocation3], %s2490
          %s2492 = sand.u32 %s243, 1
          %s2493 = smul.addr %s2492, 8
          %s2494 = scalar_lea.vmem [#allocation5], %s2493
          %2495 = dma.done %s2491, 128
        $region72: #{tpu_custom_call.1} parent=67 // pred_fallthru
          _
      $region68: #{tpu_custom_call.1} parent=5 // pred_fallthru
        _
    $region6: #{tpu_custom_call.1} parent=1 // loop_footer
      %s23 = sadd.s32 1, %s19
    $region7: #{tpu_custom_call.1} parent=1 // loop_footer_branch
      %18 = sbr.rel target = $region3
    $region8: #{tpu_custom_call.1} parent=1 // loop_exit
      _
    %2496 = vsyncpa [#allocation3], 1
    %s2497 = scalar_lea.sflag [#allocation3], 1
    %2498 = vsyncpa %s2497, 1
    %2499 = vsyncpa [#allocation4], 1
    %s2500 = scalar_lea.sflag [#allocation4], 1
    %2501 = vsyncpa %s2500, 1

</llo_original>
